<compile_context>
chip_gen: v7x
topology: tpu7x:2x2x1
jax: 0.10.0
libtpu: 0.0.40
codegen_flags: <defaults>
</compile_context>

<pallas_src>
import functools

import jax
import jax.numpy as jnp
from jax.experimental import pallas as pl
from jax.experimental.pallas import tpu as pltpu

IN_FEATURES = 2048


def _round_up(x, m):
    return ((x + m - 1) // m) * m


def _mlp_kernel(x_ref, w1_ref, b1_ref, w2_ref, b2_ref, o_ref):
    # Cast the activation tile to the MXU compute dtype *inside* the kernel so
    # the HBM copy of x keeps its original dtype (no extra boundary pass).
    x = x_ref[...].astype(w1_ref.dtype)
    # fc1 on the MXU: (rt, 2048) @ (2048, hidden), f32 accumulation.
    h = jnp.dot(x, w1_ref[...], preferred_element_type=jnp.float32)
    # bias + ReLU epilogue in f32 on the VPU (v5e-safe: no bf16 VPU needed).
    h = jnp.maximum(h + b1_ref[...], 0.0)
    # fc2: (rt, hidden) @ (hidden, 1) on the MXU -> (rt, 1). fc2 FLOPs are
    # negligible; this form never materializes a transpose of the h tile.
    o = jnp.dot(h, w2_ref[...], preferred_element_type=jnp.float32)
    o_ref[...] = jnp.maximum(o + b2_ref[...], 0.0)


@functools.partial(
    jax.jit, static_argnames=("num_proposals", "row_tile", "compute_dtype")
)
def proposal_classifier_forward(
    x, w1, b1, w2, b2, *, num_proposals, row_tile=512,
    compute_dtype=jnp.bfloat16,
):
    """x: (batch, num_proposals, 2048) -> (batch, num_proposals) float32.

    w1: (2048, hidden), b1: (hidden,), w2: (hidden, 1), b2: (1,)
    (weights stored transposed relative to nn.Linear, so the kernel computes
     x @ W which equals x @ W_pt.T).
    """
    batch = x.shape[0]
    hidden = w1.shape[1]
    rows = batch * num_proposals

    # x goes straight into pallas_call in its original dtype -- no boundary
    # astype, no full-array pad on the large path.
    x2d = x.reshape(rows, IN_FEATURES)

    # Effective max tile: multiple of 128 so tiled blocks stay (8,128)-legal
    # and the bf16 cast keeps a native layout.
    row_tile_eff = max(128, (row_tile // 128) * 128)

    if rows <= row_tile_eff:
        # Tiny workload: single grid step. Round the tile to 16 (bf16 sublane
        # pack) and pad only this tiny slab if needed (negligible cost).
        rt = _round_up(rows, 16)
        if rt != rows:
            x2d = jnp.pad(x2d, ((0, rt - rows), (0, 0)))
    else:
        rt = row_tile_eff
        # v7x has 2 TensorCores and shards the 'parallel' axis across them:
        # prefer an even number of grid steps, without shrinking rt below half.
        if pl.cdiv(rows, rt) % 2 == 1:
            for cand in range(rt - 128, rt // 2 - 1, -128):
                if cand >= 128 and pl.cdiv(rows, cand) % 2 == 0:
                    rt = cand
                    break

    num_tiles = pl.cdiv(rows, rt)
    padded_rows = num_tiles * rt  # ragged tail handled by Pallas partial blocks

    # Weights are small and grid-invariant: cast w1 once at the boundary so the
    # resident VMEM block is half-size bf16; biases/fc2 stay f32.
    w1c = w1.astype(compute_dtype)
    b1r = b1.reshape(1, hidden).astype(jnp.float32)
    w2r = w2.reshape(hidden, 1).astype(jnp.float32)
    b2r = b2.reshape(1, 1).astype(jnp.float32)

    out = pl.pallas_call(
        _mlp_kernel,
        out_shape=jax.ShapeDtypeStruct((padded_rows, 1), jnp.float32),
        grid_spec=pltpu.PrefetchScalarGridSpec(
            num_scalar_prefetch=0,
            grid=(num_tiles,),
            in_specs=[
                pl.BlockSpec((rt, IN_FEATURES), lambda i: (i, 0)),      # x tile
                pl.BlockSpec((IN_FEATURES, hidden), lambda i: (0, 0)),  # w1
                pl.BlockSpec((1, hidden), lambda i: (0, 0)),            # b1
                pl.BlockSpec((hidden, 1), lambda i: (0, 0)),            # w2
                pl.BlockSpec((1, 1), lambda i: (0, 0)),                 # b2
            ],
            out_specs=pl.BlockSpec((rt, 1), lambda i: (i, 0)),
        ),
        compiler_params=pltpu.CompilerParams(
            dimension_semantics=("parallel",),
            # Above v5e's 16 MiB scoped default (rt=512 f32 x double-buffer
            # ~8 MiB + weights + epilogue scratch), below v7x's 64 MiB VMEM.
            vmem_limit_bytes=48 * 1024 * 1024,
        ),
    )(x2d, w1c, b1r, w2r, b2r)

    return out[:rows, 0].reshape(batch, num_proposals)


def _init_params(key, hidden_size=256):
    """Deterministic synthetic init matching nn.Linear shapes (stored transposed)."""
    k1, k2, k3, k4 = jax.random.split(key, 4)
    bound1 = 1.0 / (IN_FEATURES ** 0.5)
    bound2 = 1.0 / (hidden_size ** 0.5)
    w1 = jax.random.uniform(k1, (IN_FEATURES, hidden_size), jnp.float32, -bound1, bound1)
    b1 = jax.random.uniform(k2, (hidden_size,), jnp.float32, -bound1, bound1)
    w2 = jax.random.uniform(k3, (hidden_size, 1), jnp.float32, -bound2, bound2)
    b2 = jax.random.uniform(k4, (1,), jnp.float32, -bound2, bound2)
    return w1, b1, w2, b2


if __name__ == "__main__":
    key = jax.random.PRNGKey(0)
    batch = 2
    num_proposals = 8
    hidden_size = 256

    kx, kp = jax.random.split(key)
    x = jax.random.normal(kx, (batch, num_proposals, IN_FEATURES), jnp.float32)
    w1, b1, w2, b2 = _init_params(kp, hidden_size)

    out = proposal_classifier_forward(
        x, w1, b1, w2, b2, num_proposals=num_proposals
    )
    out = jax.block_until_ready(out)

    # Pure-JAX f32 reference check (kernel uses bf16 MXU operands for fc1 with
    # f32 accumulation -> slightly looser tolerance than a pure-f32 run).
    ref = jnp.maximum(x.reshape(-1, IN_FEATURES) @ w1 + b1, 0.0)
    ref = jnp.maximum(ref @ w2 + b2.reshape(1, 1), 0.0).reshape(batch, num_proposals)
    assert out.shape == (batch, num_proposals)
    assert jnp.allclose(out, ref, atol=2.5e-2, rtol=2.5e-2), (
        float(jnp.max(jnp.abs(out - ref)))
    )

    print("KERNEL_OK")
</pallas_src>

<mosaic_0001>
module attributes {stable_mosaic.version = 11 : i64} {
  func.func @_mlp_kernel(%arg0: i32, %arg1: memref<16x2048xf32, #tpu.memory_space<vmem>>, %arg2: memref<2048x256xbf16, #tpu.memory_space<vmem>>, %arg3: memref<1x256xf32, #tpu.memory_space<vmem>>, %arg4: memref<256x1xf32, #tpu.memory_space<vmem>>, %arg5: memref<1x1xf32, #tpu.memory_space<vmem>>, %arg6: memref<16x1xf32, #tpu.memory_space<vmem>>) attributes {dimension_semantics = [#tpu.dimension_semantics<parallel>], iteration_bounds = array<i64: 1>, scalar_prefetch = 0 : i64, scratch_operands = 0 : i64, tpu.core_type = #tpu.core_type<tc>, window_params = [{transform_indices = @transform_0, window_bounds = array<i64: 16, 2048>}, {pipeline_mode = #tpu.pipeline_mode<synchronous>, transform_indices = @transform_1, window_bounds = array<i64: 2048, 256>}, {pipeline_mode = #tpu.pipeline_mode<synchronous>, transform_indices = @transform_2, window_bounds = array<i64: 1, 256>}, {pipeline_mode = #tpu.pipeline_mode<synchronous>, transform_indices = @transform_3, window_bounds = array<i64: 256, 1>}, {pipeline_mode = #tpu.pipeline_mode<synchronous>, transform_indices = @transform_4, window_bounds = array<i64: 1, 1>}, {transform_indices = @transform_5, window_bounds = array<i64: 16, 1>}]} {
    %c0 = arith.constant 0 : index
    %c0_0 = arith.constant 0 : index
    %0 = vector.load %arg1[%c0, %c0_0] : memref<16x2048xf32, #tpu.memory_space<vmem>>, vector<16x2048xf32>
    %1 = arith.truncf %0 : vector<16x2048xf32> to vector<16x2048xbf16>
    %c0_1 = arith.constant 0 : index
    %c0_2 = arith.constant 0 : index
    %2 = vector.load %arg2[%c0_1, %c0_2] : memref<2048x256xbf16, #tpu.memory_space<vmem>>, vector<2048x256xbf16>
    %cst = arith.constant dense<0.000000e+00> : vector<16x256xf32>
    %3 = tpu.matmul %1, %2, %cst {dimension_numbers = #tpu.dot_dimension_numbers<[1], [0], [0], [1], [0, 0, 1, 1], [], []>} : vector<16x2048xbf16>, vector<2048x256xbf16>, vector<16x256xf32> -> vector<16x256xf32>
    %c0_3 = arith.constant 0 : index
    %c0_4 = arith.constant 0 : index
    %4 = vector.load %arg3[%c0_3, %c0_4] : memref<1x256xf32, #tpu.memory_space<vmem>>, vector<1x256xf32>
    %5 = vector.broadcast %4 : vector<1x256xf32> to vector<16x256xf32>
    %6 = arith.addf %3, %5 : vector<16x256xf32>
    %cst_5 = arith.constant 0.000000e+00 : f32
    %7 = vector.broadcast %cst_5 : f32 to vector<16x256xf32>
    %8 = arith.maximumf %6, %7 : vector<16x256xf32>
    %c0_6 = arith.constant 0 : index
    %c0_7 = arith.constant 0 : index
    %9 = vector.load %arg4[%c0_6, %c0_7] : memref<256x1xf32, #tpu.memory_space<vmem>>, vector<256x1xf32>
    %cst_8 = arith.constant dense<0.000000e+00> : vector<16x1xf32>
    %10 = tpu.matmul %8, %9, %cst_8 {dimension_numbers = #tpu.dot_dimension_numbers<[1], [0], [0], [1], [0, 0, 1, 1], [], []>} : vector<16x256xf32>, vector<256x1xf32>, vector<16x1xf32> -> vector<16x1xf32>
    %c0_9 = arith.constant 0 : index
    %c0_10 = arith.constant 0 : index
    %11 = vector.load %arg5[%c0_9, %c0_10] : memref<1x1xf32, #tpu.memory_space<vmem>>, vector<1x1xf32>
    %12 = vector.broadcast %11 : vector<1x1xf32> to vector<16x1xf32>
    %13 = arith.addf %10, %12 : vector<16x1xf32>
    %cst_11 = arith.constant 0.000000e+00 : f32
    %14 = vector.broadcast %cst_11 : f32 to vector<16x1xf32>
    %15 = arith.maximumf %13, %14 : vector<16x1xf32>
    %c0_12 = arith.constant 0 : index
    %c0_13 = arith.constant 0 : index
    %16 = vector.load %arg6[%c0_12, %c0_13] : memref<16x1xf32, #tpu.memory_space<vmem>>, vector<16x1xf32>
    tpu.vector_store %arg6[%c0_12, %c0_13], %15 {strides = array<i32>} : memref<16x1xf32, #tpu.memory_space<vmem>>, vector<16x1xf32>,
    return
  }
  func.func @transform_0(%arg0: i32) -> (i32, i32) {
    %c0_i32 = arith.constant 0 : i32
    %c0_i32_0 = arith.constant 0 : i32
    return %arg0, %c0_i32 : i32, i32
  }
  func.func @transform_1(%arg0: i32) -> (i32, i32) {
    %c0_i32 = arith.constant 0 : i32
    %c0_i32_0 = arith.constant 0 : i32
    %c0_i32_1 = arith.constant 0 : i32
    return %c0_i32, %c0_i32_0 : i32, i32
  }
  func.func @transform_2(%arg0: i32) -> (i32, i32) {
    %c0_i32 = arith.constant 0 : i32
    %c0_i32_0 = arith.constant 0 : i32
    %c0_i32_1 = arith.constant 0 : i32
    return %c0_i32, %c0_i32_0 : i32, i32
  }
  func.func @transform_3(%arg0: i32) -> (i32, i32) {
    %c0_i32 = arith.constant 0 : i32
    %c0_i32_0 = arith.constant 0 : i32
    %c0_i32_1 = arith.constant 0 : i32
    return %c0_i32, %c0_i32_0 : i32, i32
  }
  func.func @transform_4(%arg0: i32) -> (i32, i32) {
    %c0_i32 = arith.constant 0 : i32
    %c0_i32_0 = arith.constant 0 : i32
    %c0_i32_1 = arith.constant 0 : i32
    return %c0_i32, %c0_i32_0 : i32, i32
  }
  func.func @transform_5(%arg0: i32) -> (i32, i32) {
    %c0_i32 = arith.constant 0 : i32
    %c0_i32_0 = arith.constant 0 : i32
    return %arg0, %c0_i32 : i32, i32
  }
}

</mosaic_0001>

<llo_original>
// kernel: squeeze.1
$region0: #{squeeze.1}
  %s0 = inlined_call_operand.vmem [shape: f32[16], index: 0, kind: input, shape index: {}]
  %s1 = inlined_call_operand.hbm [shape: f32[2,8], index: 1, kind: output, shape index: {}]
  $region1: #{squeeze.1} parent=0
    #allocation0 [shape = 'u8[1024]{0}', space=vmem, size = 0x400, scoped, tag = 'operand span for operand 1']
    #allocation1 [shape = 's32[1]{0}', space=sflag, size = 0x4, scoped, tag = 'scoped memory for squeeze.1']
    #allocation2 [shape = 'u8[4096]{0}', space=vmem, size = 0x1000, scoped, tag = 'scoped mem for output reshape']
    #allocation3 [shape = 'u8[4096]{0}', space=vmem, size = 0x1000, scoped, tag = 'scoped mem for input reshape']
    %2 = vsyncpa [#allocation1], 0
    %s4 = sshllo.u32 0, 1
    %v5 = vld [vmem:[%s0] sm:%s4]
    %6 = vst [vmem:[#allocation3] sm:%s4] %v5
    %v7 = vld [vmem:[#allocation3] sm:$0x1]
    %vm8 = vcmask 64512
    %9 = vst.msk [vmem:[#allocation2] sm:$0x1] %vm8, %v7
    %v10 = vld [vmem:[#allocation3] sm:$0x1]
    %11 = vrot.lane.b32.xlu0 %v10, 120
    %v12 = vpop.permute.xlu0 %11
    %vm13 = vcmask 64512
    %s14 = scalar_lea.vmem [#allocation2], 1
    %15 = vst.msk [vmem:[%s14] sm:$0x1] %vm13, %v12
    %s17 = sshllo.u32 0, 2
    %v19 = vld [vmem:[#allocation2] sm:%s17]
    %s20 = sshllo.u32 0, 2
    %21 = vst [vmem:[#allocation0] sm:%s20] %v19
    %s23 = ssub.s32 32, 32
    %24 = vsyncadd [#allocation1], %s23
    %s26 = sshll.u32 [#allocation0], 4
    %s27 = int_to_ptr.vmem [resolvable:$true] %s26
    %29 = dma.vmem_to_hbm [thread:$0]  %s27, 32, %s1, [#allocation1]
    %30 = dma.done [#allocation1], 32
    %31 = vsyncpa [#allocation1], 1

// kernel: proposal_classifier_forward.1
$region0: #{proposal_classifier_forward.1}
  #allocation0 [shape = 'u32[]', space=smem, size = 0x4, offset = 0x4, fixed_abs, tag = 'smem constant byte address 0x4 - core index']
  #allocation1 [shape = 'u32[144,128]{1,0:T(1,128)}', space=vmem, size = 0x12000, scoped, tag = 'internal scratch']
  #allocation2 [shape = 'f32[1,1]{1,0:T(1,128)S(1)}', space=vmem, size = 0x200, scoped, tag = 'scoped memory for proposal_classifier_forward.1']
  %s0 = inlined_call_operand.vmem [shape: f32[16,2048], index: 0, kind: input, shape index: {}]
  %s1 = inlined_call_operand.vmem [shape: bf16[2048,256], index: 1, kind: input, shape index: {}]
  %s2 = inlined_call_operand.vmem [shape: f32[1,256], index: 2, kind: input, shape index: {}]
  %s3 = inlined_call_operand.vmem [shape: f32[256,1], index: 3, kind: input, shape index: {}]
  %s4 = inlined_call_operand.<no memory space> [shape: f32[1,1], index: 4, kind: input, shape index: {}]
  %s5 = inlined_call_operand.vmem [shape: f32[16,1], index: 5, kind: output, shape index: {}]
  %s6 = sld [smem:[#allocation0]]
  $region30: #{proposal_classifier_forward.1} parent=0
    _
  %s8 = ssub.s32 1, %s6
  %s9 = scalar_select 0, %s8, %s6
  %v10 = vstv %s4
  %11 = vst [vmem:[#allocation2] sm:$0x1] %v10
  // Predicated region
  $region2: #{proposal_classifier_forward.1} parent=0 // pred_check
    _
  $region3: #{proposal_classifier_forward.1} parent=0 // pred_check_branch
    %13 = sbr.rel (0) target = $region5
  $region4: #{proposal_classifier_forward.1} parent=0 // pred_region
    _
  $region5: #{proposal_classifier_forward.1} parent=0 // pred_fallthru
    _
  // Predicated region
  $region6: #{proposal_classifier_forward.1} parent=0 // pred_check
    _
  $region7: #{proposal_classifier_forward.1} parent=0 // pred_check_branch
    %15 = sbr.rel (0) target = $region9
  $region8: #{proposal_classifier_forward.1} parent=0 // pred_region
    _
  $region9: #{proposal_classifier_forward.1} parent=0 // pred_fallthru
    _
  // Predicated region
  $region10: #{proposal_classifier_forward.1} parent=0 // pred_check
    _
  $region11: #{proposal_classifier_forward.1} parent=0 // pred_check_branch
    %17 = sbr.rel (0) target = $region13
  $region12: #{proposal_classifier_forward.1} parent=0 // pred_region
    _
  $region13: #{proposal_classifier_forward.1} parent=0 // pred_fallthru
    _
  // Predicated region
  $region14: #{proposal_classifier_forward.1} parent=0 // pred_check
    _
  $region15: #{proposal_classifier_forward.1} parent=0 // pred_check_branch
    %19 = sbr.rel (0) target = $region17
  $region16: #{proposal_classifier_forward.1} parent=0 // pred_region
    _
  $region17: #{proposal_classifier_forward.1} parent=0 // pred_fallthru
    _
  // Predicated region
  $region18: #{proposal_classifier_forward.1} parent=0 // pred_check
    _
  $region19: #{proposal_classifier_forward.1} parent=0 // pred_check_branch
    %21 = sbr.rel (0) target = $region21
  $region20: #{proposal_classifier_forward.1} parent=0 // pred_region
    _
  $region21: #{proposal_classifier_forward.1} parent=0 // pred_fallthru
    _
  %v22 = vld [vmem:[%s0] sm:$0xff]
  %v23 = vld [vmem:[%s0 + $0x8] sm:$0xff]
  %v24 = vld [vmem:[%s0 + $0x10] sm:$0xff]
  %v25 = vld [vmem:[%s0 + $0x18] sm:$0xff]
  %v26 = vld [vmem:[%s0 + $0x20] sm:$0xff]
  %v27 = vld [vmem:[%s0 + $0x28] sm:$0xff]
  %v28 = vld [vmem:[%s0 + $0x30] sm:$0xff]
  %v29 = vld [vmem:[%s0 + $0x38] sm:$0xff]
  %v30 = vld [vmem:[%s0 + $0x40] sm:$0xff]
  %v31 = vld [vmem:[%s0 + $0x48] sm:$0xff]
  %v32 = vld [vmem:[%s0 + $0x50] sm:$0xff]
  %v33 = vld [vmem:[%s0 + $0x58] sm:$0xff]
  %v34 = vld [vmem:[%s0 + $0x60] sm:$0xff]
  %v35 = vld [vmem:[%s0 + $0x68] sm:$0xff]
  %v36 = vld [vmem:[%s0 + $0x70] sm:$0xff]
  %v37 = vld [vmem:[%s0 + $0x78] sm:$0xff]
  %v38 = vld [vmem:[%s0 + $0x80] sm:$0xff]
  %v39 = vld [vmem:[%s0 + $0x88] sm:$0xff]
  %v40 = vld [vmem:[%s0 + $0x90] sm:$0xff]
  %v41 = vld [vmem:[%s0 + $0x98] sm:$0xff]
  %v42 = vld [vmem:[%s0 + $0xa0] sm:$0xff]
  %v43 = vld [vmem:[%s0 + $0xa8] sm:$0xff]
  %v44 = vld [vmem:[%s0 + $0xb0] sm:$0xff]
  %v45 = vld [vmem:[%s0 + $0xb8] sm:$0xff]
  %v46 = vld [vmem:[%s0 + $0xc0] sm:$0xff]
  %v47 = vld [vmem:[%s0 + $0xc8] sm:$0xff]
  %v48 = vld [vmem:[%s0 + $0xd0] sm:$0xff]
  %v49 = vld [vmem:[%s0 + $0xd8] sm:$0xff]
  %v50 = vld [vmem:[%s0 + $0xe0] sm:$0xff]
  %v51 = vld [vmem:[%s0 + $0xe8] sm:$0xff]
  %v52 = vld [vmem:[%s0 + $0xf0] sm:$0xff]
  %v53 = vld [vmem:[%s0 + $0xf8] sm:$0xff]
  %v54 = vpack.c.bf16 %v38, %v22
  %v55 = vpack.c.bf16 %v39, %v23
  %v56 = vpack.c.bf16 %v40, %v24
  %v57 = vpack.c.bf16 %v41, %v25
  %v58 = vpack.c.bf16 %v42, %v26
  %v59 = vpack.c.bf16 %v43, %v27
  %v60 = vpack.c.bf16 %v44, %v28
  %v61 = vpack.c.bf16 %v45, %v29
  %v62 = vpack.c.bf16 %v46, %v30
  %v63 = vpack.c.bf16 %v47, %v31
  %v64 = vpack.c.bf16 %v48, %v32
  %v65 = vpack.c.bf16 %v49, %v33
  %v66 = vpack.c.bf16 %v50, %v34
  %v67 = vpack.c.bf16 %v51, %v35
  %v68 = vpack.c.bf16 %v52, %v36
  %v69 = vpack.c.bf16 %v53, %v37
  %v70 = vld [vmem:[%s1] sm:$0xff]
  %v71 = vld [vmem:[%s1 + $0x8] sm:$0xff]
  %v72 = vld [vmem:[%s1 + $0x10] sm:$0xff]
  %v73 = vld [vmem:[%s1 + $0x18] sm:$0xff]
  %v74 = vld [vmem:[%s1 + $0x20] sm:$0xff]
  %v75 = vld [vmem:[%s1 + $0x28] sm:$0xff]
  %v76 = vld [vmem:[%s1 + $0x30] sm:$0xff]
  %v77 = vld [vmem:[%s1 + $0x38] sm:$0xff]
  %v78 = vld [vmem:[%s1 + $0x40] sm:$0xff]
  %v79 = vld [vmem:[%s1 + $0x48] sm:$0xff]
  %v80 = vld [vmem:[%s1 + $0x50] sm:$0xff]
  %v81 = vld [vmem:[%s1 + $0x58] sm:$0xff]
  %v82 = vld [vmem:[%s1 + $0x60] sm:$0xff]
  %v83 = vld [vmem:[%s1 + $0x68] sm:$0xff]
  %v84 = vld [vmem:[%s1 + $0x70] sm:$0xff]
  %v85 = vld [vmem:[%s1 + $0x78] sm:$0xff]
  %v86 = vld [vmem:[%s1 + $0x80] sm:$0xff]
  %v87 = vld [vmem:[%s1 + $0x88] sm:$0xff]
  %v88 = vld [vmem:[%s1 + $0x90] sm:$0xff]
  %v89 = vld [vmem:[%s1 + $0x98] sm:$0xff]
  %v90 = vld [vmem:[%s1 + $0xa0] sm:$0xff]
  %v91 = vld [vmem:[%s1 + $0xa8] sm:$0xff]
  %v92 = vld [vmem:[%s1 + $0xb0] sm:$0xff]
  %v93 = vld [vmem:[%s1 + $0xb8] sm:$0xff]
  %v94 = vld [vmem:[%s1 + $0xc0] sm:$0xff]
  %v95 = vld [vmem:[%s1 + $0xc8] sm:$0xff]
  %v96 = vld [vmem:[%s1 + $0xd0] sm:$0xff]
  %v97 = vld [vmem:[%s1 + $0xd8] sm:$0xff]
  %v98 = vld [vmem:[%s1 + $0xe0] sm:$0xff]
  %v99 = vld [vmem:[%s1 + $0xe8] sm:$0xff]
  %v100 = vld [vmem:[%s1 + $0xf0] sm:$0xff]
  %v101 = vld [vmem:[%s1 + $0xf8] sm:$0xff]
  %v102 = vld [vmem:[%s1 + $0x100] sm:$0xff]
  %v103 = vld [vmem:[%s1 + $0x108] sm:$0xff]
  %v104 = vld [vmem:[%s1 + $0x110] sm:$0xff]
  %v105 = vld [vmem:[%s1 + $0x118] sm:$0xff]
  %v106 = vld [vmem:[%s1 + $0x120] sm:$0xff]
  %v107 = vld [vmem:[%s1 + $0x128] sm:$0xff]
  %v108 = vld [vmem:[%s1 + $0x130] sm:$0xff]
  %v109 = vld [vmem:[%s1 + $0x138] sm:$0xff]
  %v110 = vld [vmem:[%s1 + $0x140] sm:$0xff]
  %v111 = vld [vmem:[%s1 + $0x148] sm:$0xff]
  %v112 = vld [vmem:[%s1 + $0x150] sm:$0xff]
  %v113 = vld [vmem:[%s1 + $0x158] sm:$0xff]
  %v114 = vld [vmem:[%s1 + $0x160] sm:$0xff]
  %v115 = vld [vmem:[%s1 + $0x168] sm:$0xff]
  %v116 = vld [vmem:[%s1 + $0x170] sm:$0xff]
  %v117 = vld [vmem:[%s1 + $0x178] sm:$0xff]
  %v118 = vld [vmem:[%s1 + $0x180] sm:$0xff]
  %v119 = vld [vmem:[%s1 + $0x188] sm:$0xff]
  %v120 = vld [vmem:[%s1 + $0x190] sm:$0xff]
  %v121 = vld [vmem:[%s1 + $0x198] sm:$0xff]
  %v122 = vld [vmem:[%s1 + $0x1a0] sm:$0xff]
  %v123 = vld [vmem:[%s1 + $0x1a8] sm:$0xff]
  %v124 = vld [vmem:[%s1 + $0x1b0] sm:$0xff]
  %v125 = vld [vmem:[%s1 + $0x1b8] sm:$0xff]
  %v126 = vld [vmem:[%s1 + $0x1c0] sm:$0xff]
  %v127 = vld [vmem:[%s1 + $0x1c8] sm:$0xff]
  %v128 = vld [vmem:[%s1 + $0x1d0] sm:$0xff]
  %v129 = vld [vmem:[%s1 + $0x1d8] sm:$0xff]
  %v130 = vld [vmem:[%s1 + $0x1e0] sm:$0xff]
  %v131 = vld [vmem:[%s1 + $0x1e8] sm:$0xff]
  %v132 = vld [vmem:[%s1 + $0x1f0] sm:$0xff]
  %v133 = vld [vmem:[%s1 + $0x1f8] sm:$0xff]
  %v134 = vld [vmem:[%s1 + $0x200] sm:$0xff]
  %v135 = vld [vmem:[%s1 + $0x208] sm:$0xff]
  %v136 = vld [vmem:[%s1 + $0x210] sm:$0xff]
  %v137 = vld [vmem:[%s1 + $0x218] sm:$0xff]
  %v138 = vld [vmem:[%s1 + $0x220] sm:$0xff]
  %v139 = vld [vmem:[%s1 + $0x228] sm:$0xff]
  %v140 = vld [vmem:[%s1 + $0x230] sm:$0xff]
  %v141 = vld [vmem:[%s1 + $0x238] sm:$0xff]
  %v142 = vld [vmem:[%s1 + $0x240] sm:$0xff]
  %v143 = vld [vmem:[%s1 + $0x248] sm:$0xff]
  %v144 = vld [vmem:[%s1 + $0x250] sm:$0xff]
  %v145 = vld [vmem:[%s1 + $0x258] sm:$0xff]
  %v146 = vld [vmem:[%s1 + $0x260] sm:$0xff]
  %v147 = vld [vmem:[%s1 + $0x268] sm:$0xff]
  %v148 = vld [vmem:[%s1 + $0x270] sm:$0xff]
  %v149 = vld [vmem:[%s1 + $0x278] sm:$0xff]
  %v150 = vld [vmem:[%s1 + $0x280] sm:$0xff]
  %v151 = vld [vmem:[%s1 + $0x288] sm:$0xff]
  %v152 = vld [vmem:[%s1 + $0x290] sm:$0xff]
  %v153 = vld [vmem:[%s1 + $0x298] sm:$0xff]
  %v154 = vld [vmem:[%s1 + $0x2a0] sm:$0xff]
  %v155 = vld [vmem:[%s1 + $0x2a8] sm:$0xff]
  %v156 = vld [vmem:[%s1 + $0x2b0] sm:$0xff]
  %v157 = vld [vmem:[%s1 + $0x2b8] sm:$0xff]
  %v158 = vld [vmem:[%s1 + $0x2c0] sm:$0xff]
  %v159 = vld [vmem:[%s1 + $0x2c8] sm:$0xff]
  %v160 = vld [vmem:[%s1 + $0x2d0] sm:$0xff]
  %v161 = vld [vmem:[%s1 + $0x2d8] sm:$0xff]
  %v162 = vld [vmem:[%s1 + $0x2e0] sm:$0xff]
  %v163 = vld [vmem:[%s1 + $0x2e8] sm:$0xff]
  %v164 = vld [vmem:[%s1 + $0x2f0] sm:$0xff]
  %v165 = vld [vmem:[%s1 + $0x2f8] sm:$0xff]
  %v166 = vld [vmem:[%s1 + $0x300] sm:$0xff]
  %v167 = vld [vmem:[%s1 + $0x308] sm:$0xff]
  %v168 = vld [vmem:[%s1 + $0x310] sm:$0xff]
  %v169 = vld [vmem:[%s1 + $0x318] sm:$0xff]
  %v170 = vld [vmem:[%s1 + $0x320] sm:$0xff]
  %v171 = vld [vmem:[%s1 + $0x328] sm:$0xff]
  %v172 = vld [vmem:[%s1 + $0x330] sm:$0xff]
  %v173 = vld [vmem:[%s1 + $0x338] sm:$0xff]
  %v174 = vld [vmem:[%s1 + $0x340] sm:$0xff]
  %v175 = vld [vmem:[%s1 + $0x348] sm:$0xff]
  %v176 = vld [vmem:[%s1 + $0x350] sm:$0xff]
  %v177 = vld [vmem:[%s1 + $0x358] sm:$0xff]
  %v178 = vld [vmem:[%s1 + $0x360] sm:$0xff]
  %v179 = vld [vmem:[%s1 + $0x368] sm:$0xff]
  %v180 = vld [vmem:[%s1 + $0x370] sm:$0xff]
  %v181 = vld [vmem:[%s1 + $0x378] sm:$0xff]
  %v182 = vld [vmem:[%s1 + $0x380] sm:$0xff]
  %v183 = vld [vmem:[%s1 + $0x388] sm:$0xff]
  %v184 = vld [vmem:[%s1 + $0x390] sm:$0xff]
  %v185 = vld [vmem:[%s1 + $0x398] sm:$0xff]
  %v186 = vld [vmem:[%s1 + $0x3a0] sm:$0xff]
  %v187 = vld [vmem:[%s1 + $0x3a8] sm:$0xff]
  %v188 = vld [vmem:[%s1 + $0x3b0] sm:$0xff]
  %v189 = vld [vmem:[%s1 + $0x3b8] sm:$0xff]
  %v190 = vld [vmem:[%s1 + $0x3c0] sm:$0xff]
  %v191 = vld [vmem:[%s1 + $0x3c8] sm:$0xff]
  %v192 = vld [vmem:[%s1 + $0x3d0] sm:$0xff]
  %v193 = vld [vmem:[%s1 + $0x3d8] sm:$0xff]
  %v194 = vld [vmem:[%s1 + $0x3e0] sm:$0xff]
  %v195 = vld [vmem:[%s1 + $0x3e8] sm:$0xff]
  %v196 = vld [vmem:[%s1 + $0x3f0] sm:$0xff]
  %v197 = vld [vmem:[%s1 + $0x3f8] sm:$0xff]
  %v198 = vld [vmem:[%s1 + $0x400] sm:$0xff]
  %v199 = vld [vmem:[%s1 + $0x408] sm:$0xff]
  %v200 = vld [vmem:[%s1 + $0x410] sm:$0xff]
  %v201 = vld [vmem:[%s1 + $0x418] sm:$0xff]
  %v202 = vld [vmem:[%s1 + $0x420] sm:$0xff]
  %v203 = vld [vmem:[%s1 + $0x428] sm:$0xff]
  %v204 = vld [vmem:[%s1 + $0x430] sm:$0xff]
  %v205 = vld [vmem:[%s1 + $0x438] sm:$0xff]
  %v206 = vld [vmem:[%s1 + $0x440] sm:$0xff]
  %v207 = vld [vmem:[%s1 + $0x448] sm:$0xff]
  %v208 = vld [vmem:[%s1 + $0x450] sm:$0xff]
  %v209 = vld [vmem:[%s1 + $0x458] sm:$0xff]
  %v210 = vld [vmem:[%s1 + $0x460] sm:$0xff]
  %v211 = vld [vmem:[%s1 + $0x468] sm:$0xff]
  %v212 = vld [vmem:[%s1 + $0x470] sm:$0xff]
  %v213 = vld [vmem:[%s1 + $0x478] sm:$0xff]
  %v214 = vld [vmem:[%s1 + $0x480] sm:$0xff]
  %v215 = vld [vmem:[%s1 + $0x488] sm:$0xff]
  %v216 = vld [vmem:[%s1 + $0x490] sm:$0xff]
  %v217 = vld [vmem:[%s1 + $0x498] sm:$0xff]
  %v218 = vld [vmem:[%s1 + $0x4a0] sm:$0xff]
  %v219 = vld [vmem:[%s1 + $0x4a8] sm:$0xff]
  %v220 = vld [vmem:[%s1 + $0x4b0] sm:$0xff]
  %v221 = vld [vmem:[%s1 + $0x4b8] sm:$0xff]
  %v222 = vld [vmem:[%s1 + $0x4c0] sm:$0xff]
  %v223 = vld [vmem:[%s1 + $0x4c8] sm:$0xff]
  %v224 = vld [vmem:[%s1 + $0x4d0] sm:$0xff]
  %v225 = vld [vmem:[%s1 + $0x4d8] sm:$0xff]
  %v226 = vld [vmem:[%s1 + $0x4e0] sm:$0xff]
  %v227 = vld [vmem:[%s1 + $0x4e8] sm:$0xff]
  %v228 = vld [vmem:[%s1 + $0x4f0] sm:$0xff]
  %v229 = vld [vmem:[%s1 + $0x4f8] sm:$0xff]
  %v230 = vld [vmem:[%s1 + $0x500] sm:$0xff]
  %v231 = vld [vmem:[%s1 + $0x508] sm:$0xff]
  %v232 = vld [vmem:[%s1 + $0x510] sm:$0xff]
  %v233 = vld [vmem:[%s1 + $0x518] sm:$0xff]
  %v234 = vld [vmem:[%s1 + $0x520] sm:$0xff]
  %v235 = vld [vmem:[%s1 + $0x528] sm:$0xff]
  %v236 = vld [vmem:[%s1 + $0x530] sm:$0xff]
  %v237 = vld [vmem:[%s1 + $0x538] sm:$0xff]
  %v238 = vld [vmem:[%s1 + $0x540] sm:$0xff]
  %v239 = vld [vmem:[%s1 + $0x548] sm:$0xff]
  %v240 = vld [vmem:[%s1 + $0x550] sm:$0xff]
  %v241 = vld [vmem:[%s1 + $0x558] sm:$0xff]
  %v242 = vld [vmem:[%s1 + $0x560] sm:$0xff]
  %v243 = vld [vmem:[%s1 + $0x568] sm:$0xff]
  %v244 = vld [vmem:[%s1 + $0x570] sm:$0xff]
  %v245 = vld [vmem:[%s1 + $0x578] sm:$0xff]
  %v246 = vld [vmem:[%s1 + $0x580] sm:$0xff]
  %v247 = vld [vmem:[%s1 + $0x588] sm:$0xff]
  %v248 = vld [vmem:[%s1 + $0x590] sm:$0xff]
  %v249 = vld [vmem:[%s1 + $0x598] sm:$0xff]
  %v250 = vld [vmem:[%s1 + $0x5a0] sm:$0xff]
  %v251 = vld [vmem:[%s1 + $0x5a8] sm:$0xff]
  %v252 = vld [vmem:[%s1 + $0x5b0] sm:$0xff]
  %v253 = vld [vmem:[%s1 + $0x5b8] sm:$0xff]
  %v254 = vld [vmem:[%s1 + $0x5c0] sm:$0xff]
  %v255 = vld [vmem:[%s1 + $0x5c8] sm:$0xff]
  %v256 = vld [vmem:[%s1 + $0x5d0] sm:$0xff]
  %v257 = vld [vmem:[%s1 + $0x5d8] sm:$0xff]
  %v258 = vld [vmem:[%s1 + $0x5e0] sm:$0xff]
  %v259 = vld [vmem:[%s1 + $0x5e8] sm:$0xff]
  %v260 = vld [vmem:[%s1 + $0x5f0] sm:$0xff]
  %v261 = vld [vmem:[%s1 + $0x5f8] sm:$0xff]
  %v262 = vld [vmem:[%s1 + $0x600] sm:$0xff]
  %v263 = vld [vmem:[%s1 + $0x608] sm:$0xff]
  %v264 = vld [vmem:[%s1 + $0x610] sm:$0xff]
  %v265 = vld [vmem:[%s1 + $0x618] sm:$0xff]
  %v266 = vld [vmem:[%s1 + $0x620] sm:$0xff]
  %v267 = vld [vmem:[%s1 + $0x628] sm:$0xff]
  %v268 = vld [vmem:[%s1 + $0x630] sm:$0xff]
  %v269 = vld [vmem:[%s1 + $0x638] sm:$0xff]
  %v270 = vld [vmem:[%s1 + $0x640] sm:$0xff]
  %v271 = vld [vmem:[%s1 + $0x648] sm:$0xff]
  %v272 = vld [vmem:[%s1 + $0x650] sm:$0xff]
  %v273 = vld [vmem:[%s1 + $0x658] sm:$0xff]
  %v274 = vld [vmem:[%s1 + $0x660] sm:$0xff]
  %v275 = vld [vmem:[%s1 + $0x668] sm:$0xff]
  %v276 = vld [vmem:[%s1 + $0x670] sm:$0xff]
  %v277 = vld [vmem:[%s1 + $0x678] sm:$0xff]
  %v278 = vld [vmem:[%s1 + $0x680] sm:$0xff]
  %v279 = vld [vmem:[%s1 + $0x688] sm:$0xff]
  %v280 = vld [vmem:[%s1 + $0x690] sm:$0xff]
  %v281 = vld [vmem:[%s1 + $0x698] sm:$0xff]
  %v282 = vld [vmem:[%s1 + $0x6a0] sm:$0xff]
  %v283 = vld [vmem:[%s1 + $0x6a8] sm:$0xff]
  %v284 = vld [vmem:[%s1 + $0x6b0] sm:$0xff]
  %v285 = vld [vmem:[%s1 + $0x6b8] sm:$0xff]
  %v286 = vld [vmem:[%s1 + $0x6c0] sm:$0xff]
  %v287 = vld [vmem:[%s1 + $0x6c8] sm:$0xff]
  %v288 = vld [vmem:[%s1 + $0x6d0] sm:$0xff]
  %v289 = vld [vmem:[%s1 + $0x6d8] sm:$0xff]
  %v290 = vld [vmem:[%s1 + $0x6e0] sm:$0xff]
  %v291 = vld [vmem:[%s1 + $0x6e8] sm:$0xff]
  %v292 = vld [vmem:[%s1 + $0x6f0] sm:$0xff]
  %v293 = vld [vmem:[%s1 + $0x6f8] sm:$0xff]
  %v294 = vld [vmem:[%s1 + $0x700] sm:$0xff]
  %v295 = vld [vmem:[%s1 + $0x708] sm:$0xff]
  %v296 = vld [vmem:[%s1 + $0x710] sm:$0xff]
  %v297 = vld [vmem:[%s1 + $0x718] sm:$0xff]
  %v298 = vld [vmem:[%s1 + $0x720] sm:$0xff]
  %v299 = vld [vmem:[%s1 + $0x728] sm:$0xff]
  %v300 = vld [vmem:[%s1 + $0x730] sm:$0xff]
  %v301 = vld [vmem:[%s1 + $0x738] sm:$0xff]
  %v302 = vld [vmem:[%s1 + $0x740] sm:$0xff]
  %v303 = vld [vmem:[%s1 + $0x748] sm:$0xff]
  %v304 = vld [vmem:[%s1 + $0x750] sm:$0xff]
  %v305 = vld [vmem:[%s1 + $0x758] sm:$0xff]
  %v306 = vld [vmem:[%s1 + $0x760] sm:$0xff]
  %v307 = vld [vmem:[%s1 + $0x768] sm:$0xff]
  %v308 = vld [vmem:[%s1 + $0x770] sm:$0xff]
  %v309 = vld [vmem:[%s1 + $0x778] sm:$0xff]
  %v310 = vld [vmem:[%s1 + $0x780] sm:$0xff]
  %v311 = vld [vmem:[%s1 + $0x788] sm:$0xff]
  %v312 = vld [vmem:[%s1 + $0x790] sm:$0xff]
  %v313 = vld [vmem:[%s1 + $0x798] sm:$0xff]
  %v314 = vld [vmem:[%s1 + $0x7a0] sm:$0xff]
  %v315 = vld [vmem:[%s1 + $0x7a8] sm:$0xff]
  %v316 = vld [vmem:[%s1 + $0x7b0] sm:$0xff]
  %v317 = vld [vmem:[%s1 + $0x7b8] sm:$0xff]
  %v318 = vld [vmem:[%s1 + $0x7c0] sm:$0xff]
  %v319 = vld [vmem:[%s1 + $0x7c8] sm:$0xff]
  %v320 = vld [vmem:[%s1 + $0x7d0] sm:$0xff]
  %v321 = vld [vmem:[%s1 + $0x7d8] sm:$0xff]
  %v322 = vld [vmem:[%s1 + $0x7e0] sm:$0xff]
  %v323 = vld [vmem:[%s1 + $0x7e8] sm:$0xff]
  %v324 = vld [vmem:[%s1 + $0x7f0] sm:$0xff]
  %v325 = vld [vmem:[%s1 + $0x7f8] sm:$0xff]
  %v326 = vld [vmem:[%s2] sm:$0x3]
  %v328 = vlaneseq
  %v329 = vshrl.u32 %v328, 7
  %v330 = vsub.s32 0, %v329
  %v331 = vrot.slane %v326, %v330
  %v332 = vlaneseq
  %v333 = vshrl.u32 %v332, 7
  %v334 = vsub.s32 1, %v333
  %v335 = vrot.slane %v326, %v334
  %v594 = vunpack.c.l.b16 %v70
  %v595 = vunpack.c.h.b16 %v70
  %v596 = vunpack.c.l.b16 %v71
  %v597 = vunpack.c.h.b16 %v71
  %v598 = vunpack.c.l.b16 %v72
  %v599 = vunpack.c.h.b16 %v72
  %v600 = vunpack.c.l.b16 %v73
  %v601 = vunpack.c.h.b16 %v73
  %v602 = vunpack.c.l.b16 %v74
  %v603 = vunpack.c.h.b16 %v74
  %v604 = vunpack.c.l.b16 %v75
  %v605 = vunpack.c.h.b16 %v75
  %v606 = vunpack.c.l.b16 %v76
  %v607 = vunpack.c.h.b16 %v76
  %v608 = vunpack.c.l.b16 %v77
  %v609 = vunpack.c.h.b16 %v77
  %v610 = vunpack.c.l.b16 %v78
  %v611 = vunpack.c.h.b16 %v78
  %v612 = vunpack.c.l.b16 %v79
  %v613 = vunpack.c.h.b16 %v79
  %v614 = vunpack.c.l.b16 %v80
  %v615 = vunpack.c.h.b16 %v80
  %v616 = vunpack.c.l.b16 %v81
  %v617 = vunpack.c.h.b16 %v81
  %v618 = vunpack.c.l.b16 %v82
  %v619 = vunpack.c.h.b16 %v82
  %v620 = vunpack.c.l.b16 %v83
  %v621 = vunpack.c.h.b16 %v83
  %v622 = vunpack.c.l.b16 %v84
  %v623 = vunpack.c.h.b16 %v84
  %v624 = vunpack.c.l.b16 %v85
  %v625 = vunpack.c.h.b16 %v85
  %v626 = vunpack.c.l.b16 %v86
  %v627 = vunpack.c.h.b16 %v86
  %v628 = vunpack.c.l.b16 %v87
  %v629 = vunpack.c.h.b16 %v87
  %v630 = vunpack.c.l.b16 %v88
  %v631 = vunpack.c.h.b16 %v88
  %v632 = vunpack.c.l.b16 %v89
  %v633 = vunpack.c.h.b16 %v89
  %v634 = vunpack.c.l.b16 %v90
  %v635 = vunpack.c.h.b16 %v90
  %v636 = vunpack.c.l.b16 %v91
  %v637 = vunpack.c.h.b16 %v91
  %v638 = vunpack.c.l.b16 %v92
  %v639 = vunpack.c.h.b16 %v92
  %v640 = vunpack.c.l.b16 %v93
  %v641 = vunpack.c.h.b16 %v93
  %v642 = vunpack.c.l.b16 %v94
  %v643 = vunpack.c.h.b16 %v94
  %v644 = vunpack.c.l.b16 %v95
  %v645 = vunpack.c.h.b16 %v95
  %v646 = vunpack.c.l.b16 %v96
  %v647 = vunpack.c.h.b16 %v96
  %v648 = vunpack.c.l.b16 %v97
  %v649 = vunpack.c.h.b16 %v97
  %v650 = vunpack.c.l.b16 %v98
  %v651 = vunpack.c.h.b16 %v98
  %v652 = vunpack.c.l.b16 %v99
  %v653 = vunpack.c.h.b16 %v99
  %v654 = vunpack.c.l.b16 %v100
  %v655 = vunpack.c.h.b16 %v100
  %v656 = vunpack.c.l.b16 %v101
  %v657 = vunpack.c.h.b16 %v101
  %v658 = vunpack.c.l.b16 %v102
  %v659 = vunpack.c.h.b16 %v102
  %v660 = vunpack.c.l.b16 %v103
  %v661 = vunpack.c.h.b16 %v103
  %v662 = vunpack.c.l.b16 %v104
  %v663 = vunpack.c.h.b16 %v104
  %v664 = vunpack.c.l.b16 %v105
  %v665 = vunpack.c.h.b16 %v105
  %v666 = vunpack.c.l.b16 %v106
  %v667 = vunpack.c.h.b16 %v106
  %v668 = vunpack.c.l.b16 %v107
  %v669 = vunpack.c.h.b16 %v107
  %v670 = vunpack.c.l.b16 %v108
  %v671 = vunpack.c.h.b16 %v108
  %v672 = vunpack.c.l.b16 %v109
  %v673 = vunpack.c.h.b16 %v109
  %v674 = vunpack.c.l.b16 %v110
  %v675 = vunpack.c.h.b16 %v110
  %v676 = vunpack.c.l.b16 %v111
  %v677 = vunpack.c.h.b16 %v111
  %v678 = vunpack.c.l.b16 %v112
  %v679 = vunpack.c.h.b16 %v112
  %v680 = vunpack.c.l.b16 %v113
  %v681 = vunpack.c.h.b16 %v113
  %v682 = vunpack.c.l.b16 %v114
  %v683 = vunpack.c.h.b16 %v114
  %v684 = vunpack.c.l.b16 %v115
  %v685 = vunpack.c.h.b16 %v115
  %v686 = vunpack.c.l.b16 %v116
  %v687 = vunpack.c.h.b16 %v116
  %v688 = vunpack.c.l.b16 %v117
  %v689 = vunpack.c.h.b16 %v117
  %v690 = vunpack.c.l.b16 %v118
  %v691 = vunpack.c.h.b16 %v118
  %v692 = vunpack.c.l.b16 %v119
  %v693 = vunpack.c.h.b16 %v119
  %v694 = vunpack.c.l.b16 %v120
  %v695 = vunpack.c.h.b16 %v120
  %v696 = vunpack.c.l.b16 %v121
  %v697 = vunpack.c.h.b16 %v121
  %v698 = vunpack.c.l.b16 %v122
  %v699 = vunpack.c.h.b16 %v122
  %v700 = vunpack.c.l.b16 %v123
  %v701 = vunpack.c.h.b16 %v123
  %v702 = vunpack.c.l.b16 %v124
  %v703 = vunpack.c.h.b16 %v124
  %v704 = vunpack.c.l.b16 %v125
  %v705 = vunpack.c.h.b16 %v125
  %v706 = vunpack.c.l.b16 %v126
  %v707 = vunpack.c.h.b16 %v126
  %v708 = vunpack.c.l.b16 %v127
  %v709 = vunpack.c.h.b16 %v127
  %v710 = vunpack.c.l.b16 %v128
  %v711 = vunpack.c.h.b16 %v128
  %v712 = vunpack.c.l.b16 %v129
  %v713 = vunpack.c.h.b16 %v129
  %v714 = vunpack.c.l.b16 %v130
  %v715 = vunpack.c.h.b16 %v130
  %v716 = vunpack.c.l.b16 %v131
  %v717 = vunpack.c.h.b16 %v131
  %v718 = vunpack.c.l.b16 %v132
  %v719 = vunpack.c.h.b16 %v132
  %v720 = vunpack.c.l.b16 %v133
  %v721 = vunpack.c.h.b16 %v133
  %v722 = vunpack.c.l.b16 %v134
  %v723 = vunpack.c.h.b16 %v134
  %v724 = vunpack.c.l.b16 %v135
  %v725 = vunpack.c.h.b16 %v135
  %v726 = vunpack.c.l.b16 %v136
  %v727 = vunpack.c.h.b16 %v136
  %v728 = vunpack.c.l.b16 %v137
  %v729 = vunpack.c.h.b16 %v137
  %v730 = vunpack.c.l.b16 %v138
  %v731 = vunpack.c.h.b16 %v138
  %v732 = vunpack.c.l.b16 %v139
  %v733 = vunpack.c.h.b16 %v139
  %v734 = vunpack.c.l.b16 %v140
  %v735 = vunpack.c.h.b16 %v140
  %v736 = vunpack.c.l.b16 %v141
  %v737 = vunpack.c.h.b16 %v141
  %v738 = vunpack.c.l.b16 %v142
  %v739 = vunpack.c.h.b16 %v142
  %v740 = vunpack.c.l.b16 %v143
  %v741 = vunpack.c.h.b16 %v143
  %v742 = vunpack.c.l.b16 %v144
  %v743 = vunpack.c.h.b16 %v144
  %v744 = vunpack.c.l.b16 %v145
  %v745 = vunpack.c.h.b16 %v145
  %v746 = vunpack.c.l.b16 %v146
  %v747 = vunpack.c.h.b16 %v146
  %v748 = vunpack.c.l.b16 %v147
  %v749 = vunpack.c.h.b16 %v147
  %v750 = vunpack.c.l.b16 %v148
  %v751 = vunpack.c.h.b16 %v148
  %v752 = vunpack.c.l.b16 %v149
  %v753 = vunpack.c.h.b16 %v149
  %v754 = vunpack.c.l.b16 %v150
  %v755 = vunpack.c.h.b16 %v150
  %v756 = vunpack.c.l.b16 %v151
  %v757 = vunpack.c.h.b16 %v151
  %v758 = vunpack.c.l.b16 %v152
  %v759 = vunpack.c.h.b16 %v152
  %v760 = vunpack.c.l.b16 %v153
  %v761 = vunpack.c.h.b16 %v153
  %v762 = vunpack.c.l.b16 %v154
  %v763 = vunpack.c.h.b16 %v154
  %v764 = vunpack.c.l.b16 %v155
  %v765 = vunpack.c.h.b16 %v155
  %v766 = vunpack.c.l.b16 %v156
  %v767 = vunpack.c.h.b16 %v156
  %v768 = vunpack.c.l.b16 %v157
  %v769 = vunpack.c.h.b16 %v157
  %v770 = vunpack.c.l.b16 %v158
  %v771 = vunpack.c.h.b16 %v158
  %v772 = vunpack.c.l.b16 %v159
  %v773 = vunpack.c.h.b16 %v159
  %v774 = vunpack.c.l.b16 %v160
  %v775 = vunpack.c.h.b16 %v160
  %v776 = vunpack.c.l.b16 %v161
  %v777 = vunpack.c.h.b16 %v161
  %v778 = vunpack.c.l.b16 %v162
  %v779 = vunpack.c.h.b16 %v162
  %v780 = vunpack.c.l.b16 %v163
  %v781 = vunpack.c.h.b16 %v163
  %v782 = vunpack.c.l.b16 %v164
  %v783 = vunpack.c.h.b16 %v164
  %v784 = vunpack.c.l.b16 %v165
  %v785 = vunpack.c.h.b16 %v165
  %v786 = vunpack.c.l.b16 %v166
  %v787 = vunpack.c.h.b16 %v166
  %v788 = vunpack.c.l.b16 %v167
  %v789 = vunpack.c.h.b16 %v167
  %v790 = vunpack.c.l.b16 %v168
  %v791 = vunpack.c.h.b16 %v168
  %v792 = vunpack.c.l.b16 %v169
  %v793 = vunpack.c.h.b16 %v169
  %v794 = vunpack.c.l.b16 %v170
  %v795 = vunpack.c.h.b16 %v170
  %v796 = vunpack.c.l.b16 %v171
  %v797 = vunpack.c.h.b16 %v171
  %v798 = vunpack.c.l.b16 %v172
  %v799 = vunpack.c.h.b16 %v172
  %v800 = vunpack.c.l.b16 %v173
  %v801 = vunpack.c.h.b16 %v173
  %v802 = vunpack.c.l.b16 %v174
  %v803 = vunpack.c.h.b16 %v174
  %v804 = vunpack.c.l.b16 %v175
  %v805 = vunpack.c.h.b16 %v175
  %v806 = vunpack.c.l.b16 %v176
  %v807 = vunpack.c.h.b16 %v176
  %v808 = vunpack.c.l.b16 %v177
  %v809 = vunpack.c.h.b16 %v177
  %v810 = vunpack.c.l.b16 %v178
  %v811 = vunpack.c.h.b16 %v178
  %v812 = vunpack.c.l.b16 %v179
  %v813 = vunpack.c.h.b16 %v179
  %v814 = vunpack.c.l.b16 %v180
  %v815 = vunpack.c.h.b16 %v180
  %v816 = vunpack.c.l.b16 %v181
  %v817 = vunpack.c.h.b16 %v181
  %v818 = vunpack.c.l.b16 %v182
  %v819 = vunpack.c.h.b16 %v182
  %v820 = vunpack.c.l.b16 %v183
  %v821 = vunpack.c.h.b16 %v183
  %v822 = vunpack.c.l.b16 %v184
  %v823 = vunpack.c.h.b16 %v184
  %v824 = vunpack.c.l.b16 %v185
  %v825 = vunpack.c.h.b16 %v185
  %v826 = vunpack.c.l.b16 %v186
  %v827 = vunpack.c.h.b16 %v186
  %v828 = vunpack.c.l.b16 %v187
  %v829 = vunpack.c.h.b16 %v187
  %v830 = vunpack.c.l.b16 %v188
  %v831 = vunpack.c.h.b16 %v188
  %v832 = vunpack.c.l.b16 %v189
  %v833 = vunpack.c.h.b16 %v189
  %v834 = vunpack.c.l.b16 %v190
  %v835 = vunpack.c.h.b16 %v190
  %v836 = vunpack.c.l.b16 %v191
  %v837 = vunpack.c.h.b16 %v191
  %v838 = vunpack.c.l.b16 %v192
  %v839 = vunpack.c.h.b16 %v192
  %v840 = vunpack.c.l.b16 %v193
  %v841 = vunpack.c.h.b16 %v193
  %v842 = vunpack.c.l.b16 %v194
  %v843 = vunpack.c.h.b16 %v194
  %v844 = vunpack.c.l.b16 %v195
  %v845 = vunpack.c.h.b16 %v195
  %v846 = vunpack.c.l.b16 %v196
  %v847 = vunpack.c.h.b16 %v196
  %v848 = vunpack.c.l.b16 %v197
  %v849 = vunpack.c.h.b16 %v197
  %v850 = vunpack.c.l.b16 %v198
  %v851 = vunpack.c.h.b16 %v198
  %v852 = vunpack.c.l.b16 %v199
  %v853 = vunpack.c.h.b16 %v199
  %v854 = vunpack.c.l.b16 %v200
  %v855 = vunpack.c.h.b16 %v200
  %v856 = vunpack.c.l.b16 %v201
  %v857 = vunpack.c.h.b16 %v201
  %v858 = vunpack.c.l.b16 %v202
  %v859 = vunpack.c.h.b16 %v202
  %v860 = vunpack.c.l.b16 %v203
  %v861 = vunpack.c.h.b16 %v203
  %v862 = vunpack.c.l.b16 %v204
  %v863 = vunpack.c.h.b16 %v204
  %v864 = vunpack.c.l.b16 %v205
  %v865 = vunpack.c.h.b16 %v205
  %v866 = vunpack.c.l.b16 %v206
  %v867 = vunpack.c.h.b16 %v206
  %v868 = vunpack.c.l.b16 %v207
  %v869 = vunpack.c.h.b16 %v207
  %v870 = vunpack.c.l.b16 %v208
  %v871 = vunpack.c.h.b16 %v208
  %v872 = vunpack.c.l.b16 %v209
  %v873 = vunpack.c.h.b16 %v209
  %v874 = vunpack.c.l.b16 %v210
  %v875 = vunpack.c.h.b16 %v210
  %v876 = vunpack.c.l.b16 %v211
  %v877 = vunpack.c.h.b16 %v211
  %v878 = vunpack.c.l.b16 %v212
  %v879 = vunpack.c.h.b16 %v212
  %v880 = vunpack.c.l.b16 %v213
  %v881 = vunpack.c.h.b16 %v213
  %v882 = vunpack.c.l.b16 %v214
  %v883 = vunpack.c.h.b16 %v214
  %v884 = vunpack.c.l.b16 %v215
  %v885 = vunpack.c.h.b16 %v215
  %v886 = vunpack.c.l.b16 %v216
  %v887 = vunpack.c.h.b16 %v216
  %v888 = vunpack.c.l.b16 %v217
  %v889 = vunpack.c.h.b16 %v217
  %v890 = vunpack.c.l.b16 %v218
  %v891 = vunpack.c.h.b16 %v218
  %v892 = vunpack.c.l.b16 %v219
  %v893 = vunpack.c.h.b16 %v219
  %v894 = vunpack.c.l.b16 %v220
  %v895 = vunpack.c.h.b16 %v220
  %v896 = vunpack.c.l.b16 %v221
  %v897 = vunpack.c.h.b16 %v221
  %v898 = vunpack.c.l.b16 %v222
  %v899 = vunpack.c.h.b16 %v222
  %v900 = vunpack.c.l.b16 %v223
  %v901 = vunpack.c.h.b16 %v223
  %v902 = vunpack.c.l.b16 %v224
  %v903 = vunpack.c.h.b16 %v224
  %v904 = vunpack.c.l.b16 %v225
  %v905 = vunpack.c.h.b16 %v225
  %v906 = vunpack.c.l.b16 %v226
  %v907 = vunpack.c.h.b16 %v226
  %v908 = vunpack.c.l.b16 %v227
  %v909 = vunpack.c.h.b16 %v227
  %v910 = vunpack.c.l.b16 %v228
  %v911 = vunpack.c.h.b16 %v228
  %v912 = vunpack.c.l.b16 %v229
  %v913 = vunpack.c.h.b16 %v229
  %v914 = vunpack.c.l.b16 %v230
  %v915 = vunpack.c.h.b16 %v230
  %v916 = vunpack.c.l.b16 %v231
  %v917 = vunpack.c.h.b16 %v231
  %v918 = vunpack.c.l.b16 %v232
  %v919 = vunpack.c.h.b16 %v232
  %v920 = vunpack.c.l.b16 %v233
  %v921 = vunpack.c.h.b16 %v233
  %v922 = vunpack.c.l.b16 %v234
  %v923 = vunpack.c.h.b16 %v234
  %v924 = vunpack.c.l.b16 %v235
  %v925 = vunpack.c.h.b16 %v235
  %v926 = vunpack.c.l.b16 %v236
  %v927 = vunpack.c.h.b16 %v236
  %v928 = vunpack.c.l.b16 %v237
  %v929 = vunpack.c.h.b16 %v237
  %v930 = vunpack.c.l.b16 %v238
  %v931 = vunpack.c.h.b16 %v238
  %v932 = vunpack.c.l.b16 %v239
  %v933 = vunpack.c.h.b16 %v239
  %v934 = vunpack.c.l.b16 %v240
  %v935 = vunpack.c.h.b16 %v240
  %v936 = vunpack.c.l.b16 %v241
  %v937 = vunpack.c.h.b16 %v241
  %v938 = vunpack.c.l.b16 %v242
  %v939 = vunpack.c.h.b16 %v242
  %v940 = vunpack.c.l.b16 %v243
  %v941 = vunpack.c.h.b16 %v243
  %v942 = vunpack.c.l.b16 %v244
  %v943 = vunpack.c.h.b16 %v244
  %v944 = vunpack.c.l.b16 %v245
  %v945 = vunpack.c.h.b16 %v245
  %v946 = vunpack.c.l.b16 %v246
  %v947 = vunpack.c.h.b16 %v246
  %v948 = vunpack.c.l.b16 %v247
  %v949 = vunpack.c.h.b16 %v247
  %v950 = vunpack.c.l.b16 %v248
  %v951 = vunpack.c.h.b16 %v248
  %v952 = vunpack.c.l.b16 %v249
  %v953 = vunpack.c.h.b16 %v249
  %v954 = vunpack.c.l.b16 %v250
  %v955 = vunpack.c.h.b16 %v250
  %v956 = vunpack.c.l.b16 %v251
  %v957 = vunpack.c.h.b16 %v251
  %v958 = vunpack.c.l.b16 %v252
  %v959 = vunpack.c.h.b16 %v252
  %v960 = vunpack.c.l.b16 %v253
  %v961 = vunpack.c.h.b16 %v253
  %v962 = vunpack.c.l.b16 %v254
  %v963 = vunpack.c.h.b16 %v254
  %v964 = vunpack.c.l.b16 %v255
  %v965 = vunpack.c.h.b16 %v255
  %v966 = vunpack.c.l.b16 %v256
  %v967 = vunpack.c.h.b16 %v256
  %v968 = vunpack.c.l.b16 %v257
  %v969 = vunpack.c.h.b16 %v257
  %v970 = vunpack.c.l.b16 %v258
  %v971 = vunpack.c.h.b16 %v258
  %v972 = vunpack.c.l.b16 %v259
  %v973 = vunpack.c.h.b16 %v259
  %v974 = vunpack.c.l.b16 %v260
  %v975 = vunpack.c.h.b16 %v260
  %v976 = vunpack.c.l.b16 %v261
  %v977 = vunpack.c.h.b16 %v261
  %v978 = vunpack.c.l.b16 %v262
  %v979 = vunpack.c.h.b16 %v262
  %v980 = vunpack.c.l.b16 %v263
  %v981 = vunpack.c.h.b16 %v263
  %v982 = vunpack.c.l.b16 %v264
  %v983 = vunpack.c.h.b16 %v264
  %v984 = vunpack.c.l.b16 %v265
  %v985 = vunpack.c.h.b16 %v265
  %v986 = vunpack.c.l.b16 %v266
  %v987 = vunpack.c.h.b16 %v266
  %v988 = vunpack.c.l.b16 %v267
  %v989 = vunpack.c.h.b16 %v267
  %v990 = vunpack.c.l.b16 %v268
  %v991 = vunpack.c.h.b16 %v268
  %v992 = vunpack.c.l.b16 %v269
  %v993 = vunpack.c.h.b16 %v269
  %v994 = vunpack.c.l.b16 %v270
  %v995 = vunpack.c.h.b16 %v270
  %v996 = vunpack.c.l.b16 %v271
  %v997 = vunpack.c.h.b16 %v271
  %v998 = vunpack.c.l.b16 %v272
  %v999 = vunpack.c.h.b16 %v272
  %v1000 = vunpack.c.l.b16 %v273
  %v1001 = vunpack.c.h.b16 %v273
  %v1002 = vunpack.c.l.b16 %v274
  %v1003 = vunpack.c.h.b16 %v274
  %v1004 = vunpack.c.l.b16 %v275
  %v1005 = vunpack.c.h.b16 %v275
  %v1006 = vunpack.c.l.b16 %v276
  %v1007 = vunpack.c.h.b16 %v276
  %v1008 = vunpack.c.l.b16 %v277
  %v1009 = vunpack.c.h.b16 %v277
  %v1010 = vunpack.c.l.b16 %v278
  %v1011 = vunpack.c.h.b16 %v278
  %v1012 = vunpack.c.l.b16 %v279
  %v1013 = vunpack.c.h.b16 %v279
  %v1014 = vunpack.c.l.b16 %v280
  %v1015 = vunpack.c.h.b16 %v280
  %v1016 = vunpack.c.l.b16 %v281
  %v1017 = vunpack.c.h.b16 %v281
  %v1018 = vunpack.c.l.b16 %v282
  %v1019 = vunpack.c.h.b16 %v282
  %v1020 = vunpack.c.l.b16 %v283
  %v1021 = vunpack.c.h.b16 %v283
  %v1022 = vunpack.c.l.b16 %v284
  %v1023 = vunpack.c.h.b16 %v284
  %v1024 = vunpack.c.l.b16 %v285
  %v1025 = vunpack.c.h.b16 %v285
  %v1026 = vunpack.c.l.b16 %v286
  %v1027 = vunpack.c.h.b16 %v286
  %v1028 = vunpack.c.l.b16 %v287
  %v1029 = vunpack.c.h.b16 %v287
  %v1030 = vunpack.c.l.b16 %v288
  %v1031 = vunpack.c.h.b16 %v288
  %v1032 = vunpack.c.l.b16 %v289
  %v1033 = vunpack.c.h.b16 %v289
  %v1034 = vunpack.c.l.b16 %v290
  %v1035 = vunpack.c.h.b16 %v290
  %v1036 = vunpack.c.l.b16 %v291
  %v1037 = vunpack.c.h.b16 %v291
  %v1038 = vunpack.c.l.b16 %v292
  %v1039 = vunpack.c.h.b16 %v292
  %v1040 = vunpack.c.l.b16 %v293
  %v1041 = vunpack.c.h.b16 %v293
  %v1042 = vunpack.c.l.b16 %v294
  %v1043 = vunpack.c.h.b16 %v294
  %v1044 = vunpack.c.l.b16 %v295
  %v1045 = vunpack.c.h.b16 %v295
  %v1046 = vunpack.c.l.b16 %v296
  %v1047 = vunpack.c.h.b16 %v296
  %v1048 = vunpack.c.l.b16 %v297
  %v1049 = vunpack.c.h.b16 %v297
  %v1050 = vunpack.c.l.b16 %v298
  %v1051 = vunpack.c.h.b16 %v298
  %v1052 = vunpack.c.l.b16 %v299
  %v1053 = vunpack.c.h.b16 %v299
  %v1054 = vunpack.c.l.b16 %v300
  %v1055 = vunpack.c.h.b16 %v300
  %v1056 = vunpack.c.l.b16 %v301
  %v1057 = vunpack.c.h.b16 %v301
  %v1058 = vunpack.c.l.b16 %v302
  %v1059 = vunpack.c.h.b16 %v302
  %v1060 = vunpack.c.l.b16 %v303
  %v1061 = vunpack.c.h.b16 %v303
  %v1062 = vunpack.c.l.b16 %v304
  %v1063 = vunpack.c.h.b16 %v304
  %v1064 = vunpack.c.l.b16 %v305
  %v1065 = vunpack.c.h.b16 %v305
  %v1066 = vunpack.c.l.b16 %v306
  %v1067 = vunpack.c.h.b16 %v306
  %v1068 = vunpack.c.l.b16 %v307
  %v1069 = vunpack.c.h.b16 %v307
  %v1070 = vunpack.c.l.b16 %v308
  %v1071 = vunpack.c.h.b16 %v308
  %v1072 = vunpack.c.l.b16 %v309
  %v1073 = vunpack.c.h.b16 %v309
  %v1074 = vunpack.c.l.b16 %v310
  %v1075 = vunpack.c.h.b16 %v310
  %v1076 = vunpack.c.l.b16 %v311
  %v1077 = vunpack.c.h.b16 %v311
  %v1078 = vunpack.c.l.b16 %v312
  %v1079 = vunpack.c.h.b16 %v312
  %v1080 = vunpack.c.l.b16 %v313
  %v1081 = vunpack.c.h.b16 %v313
  %v1082 = vunpack.c.l.b16 %v314
  %v1083 = vunpack.c.h.b16 %v314
  %v1084 = vunpack.c.l.b16 %v315
  %v1085 = vunpack.c.h.b16 %v315
  %v1086 = vunpack.c.l.b16 %v316
  %v1087 = vunpack.c.h.b16 %v316
  %v1088 = vunpack.c.l.b16 %v317
  %v1089 = vunpack.c.h.b16 %v317
  %v1090 = vunpack.c.l.b16 %v318
  %v1091 = vunpack.c.h.b16 %v318
  %v1092 = vunpack.c.l.b16 %v319
  %v1093 = vunpack.c.h.b16 %v319
  %v1094 = vunpack.c.l.b16 %v320
  %v1095 = vunpack.c.h.b16 %v320
  %v1096 = vunpack.c.l.b16 %v321
  %v1097 = vunpack.c.h.b16 %v321
  %v1098 = vunpack.c.l.b16 %v322
  %v1099 = vunpack.c.h.b16 %v322
  %v1100 = vunpack.c.l.b16 %v323
  %v1101 = vunpack.c.h.b16 %v323
  %v1102 = vunpack.c.l.b16 %v324
  %v1103 = vunpack.c.h.b16 %v324
  %v1104 = vunpack.c.l.b16 %v325
  %v1105 = vunpack.c.h.b16 %v325
  %v1106 = vpack.c.b16 %v596, %v594
  %v1107 = vpack.c.b16 %v597, %v595
  %v1108 = vpack.c.b16 %v600, %v598
  %v1109 = vpack.c.b16 %v601, %v599
  %v1110 = vpack.c.b16 %v604, %v602
  %v1111 = vpack.c.b16 %v605, %v603
  %v1112 = vpack.c.b16 %v608, %v606
  %v1113 = vpack.c.b16 %v609, %v607
  %v1114 = vpack.c.b16 %v612, %v610
  %v1115 = vpack.c.b16 %v613, %v611
  %v1116 = vpack.c.b16 %v616, %v614
  %v1117 = vpack.c.b16 %v617, %v615
  %v1118 = vpack.c.b16 %v620, %v618
  %v1119 = vpack.c.b16 %v621, %v619
  %v1120 = vpack.c.b16 %v624, %v622
  %v1121 = vpack.c.b16 %v625, %v623
  %v1122 = vpack.c.b16 %v628, %v626
  %v1123 = vpack.c.b16 %v629, %v627
  %v1124 = vpack.c.b16 %v632, %v630
  %v1125 = vpack.c.b16 %v633, %v631
  %v1126 = vpack.c.b16 %v636, %v634
  %v1127 = vpack.c.b16 %v637, %v635
  %v1128 = vpack.c.b16 %v640, %v638
  %v1129 = vpack.c.b16 %v641, %v639
  %v1130 = vpack.c.b16 %v644, %v642
  %v1131 = vpack.c.b16 %v645, %v643
  %v1132 = vpack.c.b16 %v648, %v646
  %v1133 = vpack.c.b16 %v649, %v647
  %v1134 = vpack.c.b16 %v652, %v650
  %v1135 = vpack.c.b16 %v653, %v651
  %v1136 = vpack.c.b16 %v656, %v654
  %v1137 = vpack.c.b16 %v657, %v655
  %v1138 = vpack.c.b16 %v660, %v658
  %v1139 = vpack.c.b16 %v661, %v659
  %v1140 = vpack.c.b16 %v664, %v662
  %v1141 = vpack.c.b16 %v665, %v663
  %v1142 = vpack.c.b16 %v668, %v666
  %v1143 = vpack.c.b16 %v669, %v667
  %v1144 = vpack.c.b16 %v672, %v670
  %v1145 = vpack.c.b16 %v673, %v671
  %v1146 = vpack.c.b16 %v676, %v674
  %v1147 = vpack.c.b16 %v677, %v675
  %v1148 = vpack.c.b16 %v680, %v678
  %v1149 = vpack.c.b16 %v681, %v679
  %v1150 = vpack.c.b16 %v684, %v682
  %v1151 = vpack.c.b16 %v685, %v683
  %v1152 = vpack.c.b16 %v688, %v686
  %v1153 = vpack.c.b16 %v689, %v687
  %v1154 = vpack.c.b16 %v692, %v690
  %v1155 = vpack.c.b16 %v693, %v691
  %v1156 = vpack.c.b16 %v696, %v694
  %v1157 = vpack.c.b16 %v697, %v695
  %v1158 = vpack.c.b16 %v700, %v698
  %v1159 = vpack.c.b16 %v701, %v699
  %v1160 = vpack.c.b16 %v704, %v702
  %v1161 = vpack.c.b16 %v705, %v703
  %v1162 = vpack.c.b16 %v708, %v706
  %v1163 = vpack.c.b16 %v709, %v707
  %v1164 = vpack.c.b16 %v712, %v710
  %v1165 = vpack.c.b16 %v713, %v711
  %v1166 = vpack.c.b16 %v716, %v714
  %v1167 = vpack.c.b16 %v717, %v715
  %v1168 = vpack.c.b16 %v720, %v718
  %v1169 = vpack.c.b16 %v721, %v719
  %v1170 = vpack.c.b16 %v724, %v722
  %v1171 = vpack.c.b16 %v725, %v723
  %v1172 = vpack.c.b16 %v728, %v726
  %v1173 = vpack.c.b16 %v729, %v727
  %v1174 = vpack.c.b16 %v732, %v730
  %v1175 = vpack.c.b16 %v733, %v731
  %v1176 = vpack.c.b16 %v736, %v734
  %v1177 = vpack.c.b16 %v737, %v735
  %v1178 = vpack.c.b16 %v740, %v738
  %v1179 = vpack.c.b16 %v741, %v739
  %v1180 = vpack.c.b16 %v744, %v742
  %v1181 = vpack.c.b16 %v745, %v743
  %v1182 = vpack.c.b16 %v748, %v746
  %v1183 = vpack.c.b16 %v749, %v747
  %v1184 = vpack.c.b16 %v752, %v750
  %v1185 = vpack.c.b16 %v753, %v751
  %v1186 = vpack.c.b16 %v756, %v754
  %v1187 = vpack.c.b16 %v757, %v755
  %v1188 = vpack.c.b16 %v760, %v758
  %v1189 = vpack.c.b16 %v761, %v759
  %v1190 = vpack.c.b16 %v764, %v762
  %v1191 = vpack.c.b16 %v765, %v763
  %v1192 = vpack.c.b16 %v768, %v766
  %v1193 = vpack.c.b16 %v769, %v767
  %v1194 = vpack.c.b16 %v772, %v770
  %v1195 = vpack.c.b16 %v773, %v771
  %v1196 = vpack.c.b16 %v776, %v774
  %v1197 = vpack.c.b16 %v777, %v775
  %v1198 = vpack.c.b16 %v780, %v778
  %v1199 = vpack.c.b16 %v781, %v779
  %v1200 = vpack.c.b16 %v784, %v782
  %v1201 = vpack.c.b16 %v785, %v783
  %v1202 = vpack.c.b16 %v788, %v786
  %v1203 = vpack.c.b16 %v789, %v787
  %v1204 = vpack.c.b16 %v792, %v790
  %v1205 = vpack.c.b16 %v793, %v791
  %v1206 = vpack.c.b16 %v796, %v794
  %v1207 = vpack.c.b16 %v797, %v795
  %v1208 = vpack.c.b16 %v800, %v798
  %v1209 = vpack.c.b16 %v801, %v799
  %v1210 = vpack.c.b16 %v804, %v802
  %v1211 = vpack.c.b16 %v805, %v803
  %v1212 = vpack.c.b16 %v808, %v806
  %v1213 = vpack.c.b16 %v809, %v807
  %v1214 = vpack.c.b16 %v812, %v810
  %v1215 = vpack.c.b16 %v813, %v811
  %v1216 = vpack.c.b16 %v816, %v814
  %v1217 = vpack.c.b16 %v817, %v815
  %v1218 = vpack.c.b16 %v820, %v818
  %v1219 = vpack.c.b16 %v821, %v819
  %v1220 = vpack.c.b16 %v824, %v822
  %v1221 = vpack.c.b16 %v825, %v823
  %v1222 = vpack.c.b16 %v828, %v826
  %v1223 = vpack.c.b16 %v829, %v827
  %v1224 = vpack.c.b16 %v832, %v830
  %v1225 = vpack.c.b16 %v833, %v831
  %v1226 = vpack.c.b16 %v836, %v834
  %v1227 = vpack.c.b16 %v837, %v835
  %v1228 = vpack.c.b16 %v840, %v838
  %v1229 = vpack.c.b16 %v841, %v839
  %v1230 = vpack.c.b16 %v844, %v842
  %v1231 = vpack.c.b16 %v845, %v843
  %v1232 = vpack.c.b16 %v848, %v846
  %v1233 = vpack.c.b16 %v849, %v847
  %v1234 = vpack.c.b16 %v852, %v850
  %v1235 = vpack.c.b16 %v853, %v851
  %v1236 = vpack.c.b16 %v856, %v854
  %v1237 = vpack.c.b16 %v857, %v855
  %v1238 = vpack.c.b16 %v860, %v858
  %v1239 = vpack.c.b16 %v861, %v859
  %v1240 = vpack.c.b16 %v864, %v862
  %v1241 = vpack.c.b16 %v865, %v863
  %v1242 = vpack.c.b16 %v868, %v866
  %v1243 = vpack.c.b16 %v869, %v867
  %v1244 = vpack.c.b16 %v872, %v870
  %v1245 = vpack.c.b16 %v873, %v871
  %v1246 = vpack.c.b16 %v876, %v874
  %v1247 = vpack.c.b16 %v877, %v875
  %v1248 = vpack.c.b16 %v880, %v878
  %v1249 = vpack.c.b16 %v881, %v879
  %v1250 = vpack.c.b16 %v884, %v882
  %v1251 = vpack.c.b16 %v885, %v883
  %v1252 = vpack.c.b16 %v888, %v886
  %v1253 = vpack.c.b16 %v889, %v887
  %v1254 = vpack.c.b16 %v892, %v890
  %v1255 = vpack.c.b16 %v893, %v891
  %v1256 = vpack.c.b16 %v896, %v894
  %v1257 = vpack.c.b16 %v897, %v895
  %v1258 = vpack.c.b16 %v900, %v898
  %v1259 = vpack.c.b16 %v901, %v899
  %v1260 = vpack.c.b16 %v904, %v902
  %v1261 = vpack.c.b16 %v905, %v903
  %v1262 = vpack.c.b16 %v908, %v906
  %v1263 = vpack.c.b16 %v909, %v907
  %v1264 = vpack.c.b16 %v912, %v910
  %v1265 = vpack.c.b16 %v913, %v911
  %v1266 = vpack.c.b16 %v916, %v914
  %v1267 = vpack.c.b16 %v917, %v915
  %v1268 = vpack.c.b16 %v920, %v918
  %v1269 = vpack.c.b16 %v921, %v919
  %v1270 = vpack.c.b16 %v924, %v922
  %v1271 = vpack.c.b16 %v925, %v923
  %v1272 = vpack.c.b16 %v928, %v926
  %v1273 = vpack.c.b16 %v929, %v927
  %v1274 = vpack.c.b16 %v932, %v930
  %v1275 = vpack.c.b16 %v933, %v931
  %v1276 = vpack.c.b16 %v936, %v934
  %v1277 = vpack.c.b16 %v937, %v935
  %v1278 = vpack.c.b16 %v940, %v938
  %v1279 = vpack.c.b16 %v941, %v939
  %v1280 = vpack.c.b16 %v944, %v942
  %v1281 = vpack.c.b16 %v945, %v943
  %v1282 = vpack.c.b16 %v948, %v946
  %v1283 = vpack.c.b16 %v949, %v947
  %v1284 = vpack.c.b16 %v952, %v950
  %v1285 = vpack.c.b16 %v953, %v951
  %v1286 = vpack.c.b16 %v956, %v954
  %v1287 = vpack.c.b16 %v957, %v955
  %v1288 = vpack.c.b16 %v960, %v958
  %v1289 = vpack.c.b16 %v961, %v959
  %v1290 = vpack.c.b16 %v964, %v962
  %v1291 = vpack.c.b16 %v965, %v963
  %v1292 = vpack.c.b16 %v968, %v966
  %v1293 = vpack.c.b16 %v969, %v967
  %v1294 = vpack.c.b16 %v972, %v970
  %v1295 = vpack.c.b16 %v973, %v971
  %v1296 = vpack.c.b16 %v976, %v974
  %v1297 = vpack.c.b16 %v977, %v975
  %v1298 = vpack.c.b16 %v980, %v978
  %v1299 = vpack.c.b16 %v981, %v979
  %v1300 = vpack.c.b16 %v984, %v982
  %v1301 = vpack.c.b16 %v985, %v983
  %v1302 = vpack.c.b16 %v988, %v986
  %v1303 = vpack.c.b16 %v989, %v987
  %v1304 = vpack.c.b16 %v992, %v990
  %v1305 = vpack.c.b16 %v993, %v991
  %v1306 = vpack.c.b16 %v996, %v994
  %v1307 = vpack.c.b16 %v997, %v995
  %v1308 = vpack.c.b16 %v1000, %v998
  %v1309 = vpack.c.b16 %v1001, %v999
  %v1310 = vpack.c.b16 %v1004, %v1002
  %v1311 = vpack.c.b16 %v1005, %v1003
  %v1312 = vpack.c.b16 %v1008, %v1006
  %v1313 = vpack.c.b16 %v1009, %v1007
  %v1314 = vpack.c.b16 %v1012, %v1010
  %v1315 = vpack.c.b16 %v1013, %v1011
  %v1316 = vpack.c.b16 %v1016, %v1014
  %v1317 = vpack.c.b16 %v1017, %v1015
  %v1318 = vpack.c.b16 %v1020, %v1018
  %v1319 = vpack.c.b16 %v1021, %v1019
  %v1320 = vpack.c.b16 %v1024, %v1022
  %v1321 = vpack.c.b16 %v1025, %v1023
  %v1322 = vpack.c.b16 %v1028, %v1026
  %v1323 = vpack.c.b16 %v1029, %v1027
  %v1324 = vpack.c.b16 %v1032, %v1030
  %v1325 = vpack.c.b16 %v1033, %v1031
  %v1326 = vpack.c.b16 %v1036, %v1034
  %v1327 = vpack.c.b16 %v1037, %v1035
  %v1328 = vpack.c.b16 %v1040, %v1038
  %v1329 = vpack.c.b16 %v1041, %v1039
  %v1330 = vpack.c.b16 %v1044, %v1042
  %v1331 = vpack.c.b16 %v1045, %v1043
  %v1332 = vpack.c.b16 %v1048, %v1046
  %v1333 = vpack.c.b16 %v1049, %v1047
  %v1334 = vpack.c.b16 %v1052, %v1050
  %v1335 = vpack.c.b16 %v1053, %v1051
  %v1336 = vpack.c.b16 %v1056, %v1054
  %v1337 = vpack.c.b16 %v1057, %v1055
  %v1338 = vpack.c.b16 %v1060, %v1058
  %v1339 = vpack.c.b16 %v1061, %v1059
  %v1340 = vpack.c.b16 %v1064, %v1062
  %v1341 = vpack.c.b16 %v1065, %v1063
  %v1342 = vpack.c.b16 %v1068, %v1066
  %v1343 = vpack.c.b16 %v1069, %v1067
  %v1344 = vpack.c.b16 %v1072, %v1070
  %v1345 = vpack.c.b16 %v1073, %v1071
  %v1346 = vpack.c.b16 %v1076, %v1074
  %v1347 = vpack.c.b16 %v1077, %v1075
  %v1348 = vpack.c.b16 %v1080, %v1078
  %v1349 = vpack.c.b16 %v1081, %v1079
  %v1350 = vpack.c.b16 %v1084, %v1082
  %v1351 = vpack.c.b16 %v1085, %v1083
  %v1352 = vpack.c.b16 %v1088, %v1086
  %v1353 = vpack.c.b16 %v1089, %v1087
  %v1354 = vpack.c.b16 %v1092, %v1090
  %v1355 = vpack.c.b16 %v1093, %v1091
  %v1356 = vpack.c.b16 %v1096, %v1094
  %v1357 = vpack.c.b16 %v1097, %v1095
  %v1358 = vpack.c.b16 %v1100, %v1098
  %v1359 = vpack.c.b16 %v1101, %v1099
  %v1360 = vpack.c.b16 %v1104, %v1102
  %v1361 = vpack.c.b16 %v1105, %v1103
  %1618 = vmatprep.subr.bf16.mxu0 %v1107
  %1619 = vmatpush1.bf16.msra.mxu0 %v1106
  %1620 = vmatprep.subr.bf16.mxu0 %v1109
  %1621 = vmatpush1.bf16.msra.mxu0 %v1108
  %1622 = vmatprep.subr.bf16.mxu0 %v1111
  %1623 = vmatpush1.bf16.msra.mxu0 %v1110
  %1624 = vmatprep.subr.bf16.mxu0 %v1113
  %1625 = vmatpush1.bf16.msra.mxu0 %v1112
  %1626 = vmatprep.subr.bf16.mxu0 %v1115
  %1627 = vmatpush1.bf16.msra.mxu0 %v1114
  %1628 = vmatprep.subr.bf16.mxu0 %v1117
  %1629 = vmatpush1.bf16.msra.mxu0 %v1116
  %1630 = vmatprep.subr.bf16.mxu0 %v1119
  %1631 = vmatpush1.bf16.msra.mxu0 %v1118
  %1632 = vmatprep.subr.bf16.mxu0 %v1121
  %1633 = vmatpush1.bf16.msra.mxu0 %v1120
  %1634 = vmatprep.subr.bf16.mxu0 %v1123
  %1635 = vmatpush1.bf16.msra.mxu0 %v1122
  %1636 = vmatprep.subr.bf16.mxu0 %v1125
  %1637 = vmatpush1.bf16.msra.mxu0 %v1124
  %1638 = vmatprep.subr.bf16.mxu0 %v1127
  %1639 = vmatpush1.bf16.msra.mxu0 %v1126
  %1640 = vmatprep.subr.bf16.mxu0 %v1129
  %1641 = vmatpush1.bf16.msra.mxu0 %v1128
  %1642 = vmatprep.subr.bf16.mxu0 %v1131
  %1643 = vmatpush1.bf16.msra.mxu0 %v1130
  %1644 = vmatprep.subr.bf16.mxu0 %v1133
  %1645 = vmatpush1.bf16.msra.mxu0 %v1132
  %1646 = vmatprep.subr.bf16.mxu0 %v1135
  %1647 = vmatpush1.bf16.msra.mxu0 %v1134
  %1648 = vmatprep.subr.bf16.mxu0 %v1137
  %1649 = vmatpush1.bf16.msra.mxu0 %v1136
  %1650 = vmatprep.mubr.bf16.mxu0 %v55
  %1651 = vmatmul.mubr.bf16.gmra.mrb[0].mxu0 %v54
  %v1652 = vpop.f32.mrb[0].mxu0
  %v1653 = vadd.f32 %v331, %v1652
  %v1654 = vpop.f32.mrb[0].mxu0
  %v1655 = vadd.f32 %v335, %v1654
  %v1656 = vpop.f32.mrb[0].mxu0
  %v1657 = vadd.f32 %v331, %v1656
  %v1658 = vpop.f32.mrb[0].mxu0
  %v1659 = vadd.f32 %v335, %v1658
  %1660 = vdwg.mxu0
  %1661 = vmatprep.subr.bf16.mxu0 %v1139
  %1662 = vmatpush1.bf16.msra.mxu0 %v1138
  %1663 = vmatprep.subr.bf16.mxu0 %v1141
  %1664 = vmatpush1.bf16.msra.mxu0 %v1140
  %1665 = vmatprep.subr.bf16.mxu0 %v1143
  %1666 = vmatpush1.bf16.msra.mxu0 %v1142
  %1667 = vmatprep.subr.bf16.mxu0 %v1145
  %1668 = vmatpush1.bf16.msra.mxu0 %v1144
  %1669 = vmatprep.subr.bf16.mxu0 %v1147
  %1670 = vmatpush1.bf16.msra.mxu0 %v1146
  %1671 = vmatprep.subr.bf16.mxu0 %v1149
  %1672 = vmatpush1.bf16.msra.mxu0 %v1148
  %1673 = vmatprep.subr.bf16.mxu0 %v1151
  %1674 = vmatpush1.bf16.msra.mxu0 %v1150
  %1675 = vmatprep.subr.bf16.mxu0 %v1153
  %1676 = vmatpush1.bf16.msra.mxu0 %v1152
  %1677 = vmatprep.subr.bf16.mxu0 %v1155
  %1678 = vmatpush1.bf16.msra.mxu0 %v1154
  %1679 = vmatprep.subr.bf16.mxu0 %v1157
  %1680 = vmatpush1.bf16.msra.mxu0 %v1156
  %1681 = vmatprep.subr.bf16.mxu0 %v1159
  %1682 = vmatpush1.bf16.msra.mxu0 %v1158
  %1683 = vmatprep.subr.bf16.mxu0 %v1161
  %1684 = vmatpush1.bf16.msra.mxu0 %v1160
  %1685 = vmatprep.subr.bf16.mxu0 %v1163
  %1686 = vmatpush1.bf16.msra.mxu0 %v1162
  %1687 = vmatprep.subr.bf16.mxu0 %v1165
  %1688 = vmatpush1.bf16.msra.mxu0 %v1164
  %1689 = vmatprep.subr.bf16.mxu0 %v1167
  %1690 = vmatpush1.bf16.msra.mxu0 %v1166
  %1691 = vmatprep.subr.bf16.mxu0 %v1169
  %1692 = vmatpush1.bf16.msra.mxu0 %v1168
  %1693 = vmatprep.mubr.bf16.mxu0 %v57
  %1694 = vmatmul.mubr.bf16.gmra.mrb[0].mxu0 %v56
  %v1695 = vpop.f32.mrb[0].mxu0
  %v1696 = vadd.f32 %v1653, %v1695
  %v1697 = vpop.f32.mrb[0].mxu0
  %v1698 = vadd.f32 %v1655, %v1697
  %v1699 = vpop.f32.mrb[0].mxu0
  %v1700 = vadd.f32 %v1657, %v1699
  %v1701 = vpop.f32.mrb[0].mxu0
  %v1702 = vadd.f32 %v1659, %v1701
  %1703 = vdwg.mxu0
  %1704 = vmatprep.subr.bf16.mxu0 %v1171
  %1705 = vmatpush1.bf16.msra.mxu0 %v1170
  %1706 = vmatprep.subr.bf16.mxu0 %v1173
  %1707 = vmatpush1.bf16.msra.mxu0 %v1172
  %1708 = vmatprep.subr.bf16.mxu0 %v1175
  %1709 = vmatpush1.bf16.msra.mxu0 %v1174
  %1710 = vmatprep.subr.bf16.mxu0 %v1177
  %1711 = vmatpush1.bf16.msra.mxu0 %v1176
  %1712 = vmatprep.subr.bf16.mxu0 %v1179
  %1713 = vmatpush1.bf16.msra.mxu0 %v1178
  %1714 = vmatprep.subr.bf16.mxu0 %v1181
  %1715 = vmatpush1.bf16.msra.mxu0 %v1180
  %1716 = vmatprep.subr.bf16.mxu0 %v1183
  %1717 = vmatpush1.bf16.msra.mxu0 %v1182
  %1718 = vmatprep.subr.bf16.mxu0 %v1185
  %1719 = vmatpush1.bf16.msra.mxu0 %v1184
  %1720 = vmatprep.subr.bf16.mxu0 %v1187
  %1721 = vmatpush1.bf16.msra.mxu0 %v1186
  %1722 = vmatprep.subr.bf16.mxu0 %v1189
  %1723 = vmatpush1.bf16.msra.mxu0 %v1188
  %1724 = vmatprep.subr.bf16.mxu0 %v1191
  %1725 = vmatpush1.bf16.msra.mxu0 %v1190
  %1726 = vmatprep.subr.bf16.mxu0 %v1193
  %1727 = vmatpush1.bf16.msra.mxu0 %v1192
  %1728 = vmatprep.subr.bf16.mxu0 %v1195
  %1729 = vmatpush1.bf16.msra.mxu0 %v1194
  %1730 = vmatprep.subr.bf16.mxu0 %v1197
  %1731 = vmatpush1.bf16.msra.mxu0 %v1196
  %1732 = vmatprep.subr.bf16.mxu0 %v1199
  %1733 = vmatpush1.bf16.msra.mxu0 %v1198
  %1734 = vmatprep.subr.bf16.mxu0 %v1201
  %1735 = vmatpush1.bf16.msra.mxu0 %v1200
  %1736 = vmatprep.mubr.bf16.mxu0 %v59
  %1737 = vmatmul.mubr.bf16.gmra.mrb[0].mxu0 %v58
  %v1738 = vpop.f32.mrb[0].mxu0
  %v1739 = vadd.f32 %v1696, %v1738
  %v1740 = vpop.f32.mrb[0].mxu0
  %v1741 = vadd.f32 %v1698, %v1740
  %v1742 = vpop.f32.mrb[0].mxu0
  %v1743 = vadd.f32 %v1700, %v1742
  %v1744 = vpop.f32.mrb[0].mxu0
  %v1745 = vadd.f32 %v1702, %v1744
  %1746 = vdwg.mxu0
  %1747 = vmatprep.subr.bf16.mxu0 %v1203
  %1748 = vmatpush1.bf16.msra.mxu0 %v1202
  %1749 = vmatprep.subr.bf16.mxu0 %v1205
  %1750 = vmatpush1.bf16.msra.mxu0 %v1204
  %1751 = vmatprep.subr.bf16.mxu0 %v1207
  %1752 = vmatpush1.bf16.msra.mxu0 %v1206
  %1753 = vmatprep.subr.bf16.mxu0 %v1209
  %1754 = vmatpush1.bf16.msra.mxu0 %v1208
  %1755 = vmatprep.subr.bf16.mxu0 %v1211
  %1756 = vmatpush1.bf16.msra.mxu0 %v1210
  %1757 = vmatprep.subr.bf16.mxu0 %v1213
  %1758 = vmatpush1.bf16.msra.mxu0 %v1212
  %1759 = vmatprep.subr.bf16.mxu0 %v1215
  %1760 = vmatpush1.bf16.msra.mxu0 %v1214
  %1761 = vmatprep.subr.bf16.mxu0 %v1217
  %1762 = vmatpush1.bf16.msra.mxu0 %v1216
  %1763 = vmatprep.subr.bf16.mxu0 %v1219
  %1764 = vmatpush1.bf16.msra.mxu0 %v1218
  %1765 = vmatprep.subr.bf16.mxu0 %v1221
  %1766 = vmatpush1.bf16.msra.mxu0 %v1220
  %1767 = vmatprep.subr.bf16.mxu0 %v1223
  %1768 = vmatpush1.bf16.msra.mxu0 %v1222
  %1769 = vmatprep.subr.bf16.mxu0 %v1225
  %1770 = vmatpush1.bf16.msra.mxu0 %v1224
  %1771 = vmatprep.subr.bf16.mxu0 %v1227
  %1772 = vmatpush1.bf16.msra.mxu0 %v1226
  %1773 = vmatprep.subr.bf16.mxu0 %v1229
  %1774 = vmatpush1.bf16.msra.mxu0 %v1228
  %1775 = vmatprep.subr.bf16.mxu0 %v1231
  %1776 = vmatpush1.bf16.msra.mxu0 %v1230
  %1777 = vmatprep.subr.bf16.mxu0 %v1233
  %1778 = vmatpush1.bf16.msra.mxu0 %v1232
  %1779 = vmatprep.mubr.bf16.mxu0 %v61
  %1780 = vmatmul.mubr.bf16.gmra.mrb[0].mxu0 %v60
  %v1781 = vpop.f32.mrb[0].mxu0
  %v1782 = vadd.f32 %v1739, %v1781
  %v1783 = vpop.f32.mrb[0].mxu0
  %v1784 = vadd.f32 %v1741, %v1783
  %v1785 = vpop.f32.mrb[0].mxu0
  %v1786 = vadd.f32 %v1743, %v1785
  %v1787 = vpop.f32.mrb[0].mxu0
  %v1788 = vadd.f32 %v1745, %v1787
  %1789 = vdwg.mxu0
  %1790 = vmatprep.subr.bf16.mxu0 %v1235
  %1791 = vmatpush1.bf16.msra.mxu0 %v1234
  %1792 = vmatprep.subr.bf16.mxu0 %v1237
  %1793 = vmatpush1.bf16.msra.mxu0 %v1236
  %1794 = vmatprep.subr.bf16.mxu0 %v1239
  %1795 = vmatpush1.bf16.msra.mxu0 %v1238
  %1796 = vmatprep.subr.bf16.mxu0 %v1241
  %1797 = vmatpush1.bf16.msra.mxu0 %v1240
  %1798 = vmatprep.subr.bf16.mxu0 %v1243
  %1799 = vmatpush1.bf16.msra.mxu0 %v1242
  %1800 = vmatprep.subr.bf16.mxu0 %v1245
  %1801 = vmatpush1.bf16.msra.mxu0 %v1244
  %1802 = vmatprep.subr.bf16.mxu0 %v1247
  %1803 = vmatpush1.bf16.msra.mxu0 %v1246
  %1804 = vmatprep.subr.bf16.mxu0 %v1249
  %1805 = vmatpush1.bf16.msra.mxu0 %v1248
  %1806 = vmatprep.subr.bf16.mxu0 %v1251
  %1807 = vmatpush1.bf16.msra.mxu0 %v1250
  %1808 = vmatprep.subr.bf16.mxu0 %v1253
  %1809 = vmatpush1.bf16.msra.mxu0 %v1252
  %1810 = vmatprep.subr.bf16.mxu0 %v1255
  %1811 = vmatpush1.bf16.msra.mxu0 %v1254
  %1812 = vmatprep.subr.bf16.mxu0 %v1257
  %1813 = vmatpush1.bf16.msra.mxu0 %v1256
  %1814 = vmatprep.subr.bf16.mxu0 %v1259
  %1815 = vmatpush1.bf16.msra.mxu0 %v1258
  %1816 = vmatprep.subr.bf16.mxu0 %v1261
  %1817 = vmatpush1.bf16.msra.mxu0 %v1260
  %1818 = vmatprep.subr.bf16.mxu0 %v1263
  %1819 = vmatpush1.bf16.msra.mxu0 %v1262
  %1820 = vmatprep.subr.bf16.mxu0 %v1265
  %1821 = vmatpush1.bf16.msra.mxu0 %v1264
  %1822 = vmatprep.mubr.bf16.mxu0 %v63
  %1823 = vmatmul.mubr.bf16.gmra.mrb[0].mxu0 %v62
  %v1824 = vpop.f32.mrb[0].mxu0
  %v1825 = vadd.f32 %v1782, %v1824
  %v1826 = vpop.f32.mrb[0].mxu0
  %v1827 = vadd.f32 %v1784, %v1826
  %v1828 = vpop.f32.mrb[0].mxu0
  %v1829 = vadd.f32 %v1786, %v1828
  %v1830 = vpop.f32.mrb[0].mxu0
  %v1831 = vadd.f32 %v1788, %v1830
  %1832 = vdwg.mxu0
  %1833 = vmatprep.subr.bf16.mxu0 %v1267
  %1834 = vmatpush1.bf16.msra.mxu0 %v1266
  %1835 = vmatprep.subr.bf16.mxu0 %v1269
  %1836 = vmatpush1.bf16.msra.mxu0 %v1268
  %1837 = vmatprep.subr.bf16.mxu0 %v1271
  %1838 = vmatpush1.bf16.msra.mxu0 %v1270
  %1839 = vmatprep.subr.bf16.mxu0 %v1273
  %1840 = vmatpush1.bf16.msra.mxu0 %v1272
  %1841 = vmatprep.subr.bf16.mxu0 %v1275
  %1842 = vmatpush1.bf16.msra.mxu0 %v1274
  %1843 = vmatprep.subr.bf16.mxu0 %v1277
  %1844 = vmatpush1.bf16.msra.mxu0 %v1276
  %1845 = vmatprep.subr.bf16.mxu0 %v1279
  %1846 = vmatpush1.bf16.msra.mxu0 %v1278
  %1847 = vmatprep.subr.bf16.mxu0 %v1281
  %1848 = vmatpush1.bf16.msra.mxu0 %v1280
  %1849 = vmatprep.subr.bf16.mxu0 %v1283
  %1850 = vmatpush1.bf16.msra.mxu0 %v1282
  %1851 = vmatprep.subr.bf16.mxu0 %v1285
  %1852 = vmatpush1.bf16.msra.mxu0 %v1284
  %1853 = vmatprep.subr.bf16.mxu0 %v1287
  %1854 = vmatpush1.bf16.msra.mxu0 %v1286
  %1855 = vmatprep.subr.bf16.mxu0 %v1289
  %1856 = vmatpush1.bf16.msra.mxu0 %v1288
  %1857 = vmatprep.subr.bf16.mxu0 %v1291
  %1858 = vmatpush1.bf16.msra.mxu0 %v1290
  %1859 = vmatprep.subr.bf16.mxu0 %v1293
  %1860 = vmatpush1.bf16.msra.mxu0 %v1292
  %1861 = vmatprep.subr.bf16.mxu0 %v1295
  %1862 = vmatpush1.bf16.msra.mxu0 %v1294
  %1863 = vmatprep.subr.bf16.mxu0 %v1297
  %1864 = vmatpush1.bf16.msra.mxu0 %v1296
  %1865 = vmatprep.mubr.bf16.mxu0 %v65
  %1866 = vmatmul.mubr.bf16.gmra.mrb[0].mxu0 %v64
  %v1867 = vpop.f32.mrb[0].mxu0
  %v1868 = vadd.f32 %v1825, %v1867
  %v1869 = vpop.f32.mrb[0].mxu0
  %v1870 = vadd.f32 %v1827, %v1869
  %v1871 = vpop.f32.mrb[0].mxu0
  %v1872 = vadd.f32 %v1829, %v1871
  %v1873 = vpop.f32.mrb[0].mxu0
  %v1874 = vadd.f32 %v1831, %v1873
  %1875 = vdwg.mxu0
  %1876 = vmatprep.subr.bf16.mxu0 %v1299
  %1877 = vmatpush1.bf16.msra.mxu0 %v1298
  %1878 = vmatprep.subr.bf16.mxu0 %v1301
  %1879 = vmatpush1.bf16.msra.mxu0 %v1300
  %1880 = vmatprep.subr.bf16.mxu0 %v1303
  %1881 = vmatpush1.bf16.msra.mxu0 %v1302
  %1882 = vmatprep.subr.bf16.mxu0 %v1305
  %1883 = vmatpush1.bf16.msra.mxu0 %v1304
  %1884 = vmatprep.subr.bf16.mxu0 %v1307
  %1885 = vmatpush1.bf16.msra.mxu0 %v1306
  %1886 = vmatprep.subr.bf16.mxu0 %v1309
  %1887 = vmatpush1.bf16.msra.mxu0 %v1308
  %1888 = vmatprep.subr.bf16.mxu0 %v1311
  %1889 = vmatpush1.bf16.msra.mxu0 %v1310
  %1890 = vmatprep.subr.bf16.mxu0 %v1313
  %1891 = vmatpush1.bf16.msra.mxu0 %v1312
  %1892 = vmatprep.subr.bf16.mxu0 %v1315
  %1893 = vmatpush1.bf16.msra.mxu0 %v1314
  %1894 = vmatprep.subr.bf16.mxu0 %v1317
  %1895 = vmatpush1.bf16.msra.mxu0 %v1316
  %1896 = vmatprep.subr.bf16.mxu0 %v1319
  %1897 = vmatpush1.bf16.msra.mxu0 %v1318
  %1898 = vmatprep.subr.bf16.mxu0 %v1321
  %1899 = vmatpush1.bf16.msra.mxu0 %v1320
  %1900 = vmatprep.subr.bf16.mxu0 %v1323
  %1901 = vmatpush1.bf16.msra.mxu0 %v1322
  %1902 = vmatprep.subr.bf16.mxu0 %v1325
  %1903 = vmatpush1.bf16.msra.mxu0 %v1324
  %1904 = vmatprep.subr.bf16.mxu0 %v1327
  %1905 = vmatpush1.bf16.msra.mxu0 %v1326
  %1906 = vmatprep.subr.bf16.mxu0 %v1329
  %1907 = vmatpush1.bf16.msra.mxu0 %v1328
  %1908 = vmatprep.mubr.bf16.mxu0 %v67
  %1909 = vmatmul.mubr.bf16.gmra.mrb[0].mxu0 %v66
  %v1910 = vpop.f32.mrb[0].mxu0
  %v1911 = vadd.f32 %v1868, %v1910
  %v1912 = vpop.f32.mrb[0].mxu0
  %v1913 = vadd.f32 %v1870, %v1912
  %v1914 = vpop.f32.mrb[0].mxu0
  %v1915 = vadd.f32 %v1872, %v1914
  %v1916 = vpop.f32.mrb[0].mxu0
  %v1917 = vadd.f32 %v1874, %v1916
  %1918 = vdwg.mxu0
  %1919 = vmatprep.subr.bf16.mxu0 %v1331
  %1920 = vmatpush1.bf16.msra.mxu0 %v1330
  %1921 = vmatprep.subr.bf16.mxu0 %v1333
  %1922 = vmatpush1.bf16.msra.mxu0 %v1332
  %1923 = vmatprep.subr.bf16.mxu0 %v1335
  %1924 = vmatpush1.bf16.msra.mxu0 %v1334
  %1925 = vmatprep.subr.bf16.mxu0 %v1337
  %1926 = vmatpush1.bf16.msra.mxu0 %v1336
  %1927 = vmatprep.subr.bf16.mxu0 %v1339
  %1928 = vmatpush1.bf16.msra.mxu0 %v1338
  %1929 = vmatprep.subr.bf16.mxu0 %v1341
  %1930 = vmatpush1.bf16.msra.mxu0 %v1340
  %1931 = vmatprep.subr.bf16.mxu0 %v1343
  %1932 = vmatpush1.bf16.msra.mxu0 %v1342
  %1933 = vmatprep.subr.bf16.mxu0 %v1345
  %1934 = vmatpush1.bf16.msra.mxu0 %v1344
  %1935 = vmatprep.subr.bf16.mxu0 %v1347
  %1936 = vmatpush1.bf16.msra.mxu0 %v1346
  %1937 = vmatprep.subr.bf16.mxu0 %v1349
  %1938 = vmatpush1.bf16.msra.mxu0 %v1348
  %1939 = vmatprep.subr.bf16.mxu0 %v1351
  %1940 = vmatpush1.bf16.msra.mxu0 %v1350
  %1941 = vmatprep.subr.bf16.mxu0 %v1353
  %1942 = vmatpush1.bf16.msra.mxu0 %v1352
  %1943 = vmatprep.subr.bf16.mxu0 %v1355
  %1944 = vmatpush1.bf16.msra.mxu0 %v1354
  %1945 = vmatprep.subr.bf16.mxu0 %v1357
  %1946 = vmatpush1.bf16.msra.mxu0 %v1356
  %1947 = vmatprep.subr.bf16.mxu0 %v1359
  %1948 = vmatpush1.bf16.msra.mxu0 %v1358
  %1949 = vmatprep.subr.bf16.mxu0 %v1361
  %1950 = vmatpush1.bf16.msra.mxu0 %v1360
  %1951 = vmatprep.mubr.bf16.mxu0 %v69
  %1952 = vmatmul.mubr.bf16.gmra.mrb[0].mxu0 %v68
  %v1953 = vpop.f32.mrb[0].mxu0
  %v1954 = vadd.f32 %v1911, %v1953
  %v1955 = vpop.f32.mrb[0].mxu0
  %v1956 = vadd.f32 %v1913, %v1955
  %v1957 = vpop.f32.mrb[0].mxu0
  %v1958 = vadd.f32 %v1915, %v1957
  %v1959 = vpop.f32.mrb[0].mxu0
  %v1960 = vadd.f32 %v1917, %v1959
  %1961 = vdwg.mxu0
  %v1962 = vmax.f32 %v1954, 0.0
  %v1963 = vmax.f32 %v1956, 0.0
  %v1964 = vmax.f32 %v1958, 0.0
  %v1965 = vmax.f32 %v1960, 0.0
  %v1966 = vld [vmem:[%s3] sm:$0xff]
  %v1967 = vld [vmem:[%s3 + $0x8] sm:$0xff]
  %v1968 = vld [vmem:[%s3 + $0x10] sm:$0xff]
  %v1969 = vld [vmem:[%s3 + $0x18] sm:$0xff]
  %v1970 = vld [vmem:[%s3 + $0x20] sm:$0xff]
  %v1971 = vld [vmem:[%s3 + $0x28] sm:$0xff]
  %v1972 = vld [vmem:[%s3 + $0x30] sm:$0xff]
  %v1973 = vld [vmem:[%s3 + $0x38] sm:$0xff]
  %v1974 = vld [vmem:[%s3 + $0x40] sm:$0xff]
  %v1975 = vld [vmem:[%s3 + $0x48] sm:$0xff]
  %v1976 = vld [vmem:[%s3 + $0x50] sm:$0xff]
  %v1977 = vld [vmem:[%s3 + $0x58] sm:$0xff]
  %v1978 = vld [vmem:[%s3 + $0x60] sm:$0xff]
  %v1979 = vld [vmem:[%s3 + $0x68] sm:$0xff]
  %v1980 = vld [vmem:[%s3 + $0x70] sm:$0xff]
  %v1981 = vld [vmem:[%s3 + $0x78] sm:$0xff]
  %v1982 = vld [vmem:[%s3 + $0x80] sm:$0xff]
  %v1983 = vld [vmem:[%s3 + $0x88] sm:$0xff]
  %v1984 = vld [vmem:[%s3 + $0x90] sm:$0xff]
  %v1985 = vld [vmem:[%s3 + $0x98] sm:$0xff]
  %v1986 = vld [vmem:[%s3 + $0xa0] sm:$0xff]
  %v1987 = vld [vmem:[%s3 + $0xa8] sm:$0xff]
  %v1988 = vld [vmem:[%s3 + $0xb0] sm:$0xff]
  %v1989 = vld [vmem:[%s3 + $0xb8] sm:$0xff]
  %v1990 = vld [vmem:[%s3 + $0xc0] sm:$0xff]
  %v1991 = vld [vmem:[%s3 + $0xc8] sm:$0xff]
  %v1992 = vld [vmem:[%s3 + $0xd0] sm:$0xff]
  %v1993 = vld [vmem:[%s3 + $0xd8] sm:$0xff]
  %v1994 = vld [vmem:[%s3 + $0xe0] sm:$0xff]
  %v1995 = vld [vmem:[%s3 + $0xe8] sm:$0xff]
  %v1996 = vld [vmem:[%s3 + $0xf0] sm:$0xff]
  %v1997 = vld [vmem:[%s3 + $0xf8] sm:$0xff]
  %v1998 = vld [vmem:[#allocation2] sm:$0x1]
  %v2000 = vlaneseq
  %v2001 = vshrl.u32 %v2000, 7
  %v2002 = vsub.s32 0, %v2001
  %v2003 = vrot.slane %v1998, %v2002
  %2005 = vmatprep.subr.mxu0 0.0
  %2006 = vmatpush1.msra.mxu0 %v1966
  %2007 = vmatprep.subr.mxu0 0.0
  %2008 = vmatpush1.msra.mxu0 %v1967
  %2009 = vmatprep.subr.mxu0 0.0
  %2010 = vmatpush1.msra.mxu0 %v1968
  %2011 = vmatprep.subr.mxu0 0.0
  %2012 = vmatpush1.msra.mxu0 %v1969
  %2013 = vmatprep.subr.mxu0 0.0
  %2014 = vmatpush1.msra.mxu0 %v1970
  %2015 = vmatprep.subr.mxu0 0.0
  %2016 = vmatpush1.msra.mxu0 %v1971
  %2017 = vmatprep.subr.mxu0 0.0
  %2018 = vmatpush1.msra.mxu0 %v1972
  %2019 = vmatprep.subr.mxu0 0.0
  %2020 = vmatpush1.msra.mxu0 %v1973
  %2021 = vmatprep.subr.mxu0 0.0
  %2022 = vmatpush1.msra.mxu0 %v1974
  %2023 = vmatprep.subr.mxu0 0.0
  %2024 = vmatpush1.msra.mxu0 %v1975
  %2025 = vmatprep.subr.mxu0 0.0
  %2026 = vmatpush1.msra.mxu0 %v1976
  %2027 = vmatprep.subr.mxu0 0.0
  %2028 = vmatpush1.msra.mxu0 %v1977
  %2029 = vmatprep.subr.mxu0 0.0
  %2030 = vmatpush1.msra.mxu0 %v1978
  %2031 = vmatprep.subr.mxu0 0.0
  %2032 = vmatpush1.msra.mxu0 %v1979
  %2033 = vmatprep.subr.mxu0 0.0
  %2034 = vmatpush1.msra.mxu0 %v1980
  %2035 = vmatprep.subr.mxu0 0.0
  %2036 = vmatpush1.msra.mxu0 %v1981
  %2037 = vmatprep.subr.mxu0 0.0
  %2038 = vmatpush1.msra.mxu0 %v1982
  %2039 = vmatprep.subr.mxu0 0.0
  %2040 = vmatpush1.msra.mxu0 %v1983
  %2041 = vmatprep.subr.mxu0 0.0
  %2042 = vmatpush1.msra.mxu0 %v1984
  %2043 = vmatprep.subr.mxu0 0.0
  %2044 = vmatpush1.msra.mxu0 %v1985
  %2045 = vmatprep.subr.mxu0 0.0
  %2046 = vmatpush1.msra.mxu0 %v1986
  %2047 = vmatprep.subr.mxu0 0.0
  %2048 = vmatpush1.msra.mxu0 %v1987
  %2049 = vmatprep.subr.mxu0 0.0
  %2050 = vmatpush1.msra.mxu0 %v1988
  %2051 = vmatprep.subr.mxu0 0.0
  %2052 = vmatpush1.msra.mxu0 %v1989
  %2053 = vmatprep.subr.mxu0 0.0
  %2054 = vmatpush1.msra.mxu0 %v1990
  %2055 = vmatprep.subr.mxu0 0.0
  %2056 = vmatpush1.msra.mxu0 %v1991
  %2057 = vmatprep.subr.mxu0 0.0
  %2058 = vmatpush1.msra.mxu0 %v1992
  %2059 = vmatprep.subr.mxu0 0.0
  %2060 = vmatpush1.msra.mxu0 %v1993
  %2061 = vmatprep.subr.mxu0 0.0
  %2062 = vmatpush1.msra.mxu0 %v1994
  %2063 = vmatprep.subr.mxu0 0.0
  %2064 = vmatpush1.msra.mxu0 %v1995
  %2065 = vmatprep.subr.mxu0 0.0
  %2066 = vmatpush1.msra.mxu0 %v1996
  %2067 = vmatprep.subr.mxu0 0.0
  %2068 = vmatpush1.msra.mxu0 %v1997
  %2069 = vmatprep.mubr.f32.mxu0 %v1963
  %2070 = vmatmul.mubr.f32.gmra.mrb[0].mxu0 %v1962
  %v2071 = vpop.f32.mrb[0].mxu0
  %v2072 = vadd.f32 %v2003, %v2071
  %v2073 = vpop.f32.mrb[0].mxu0
  %2074 = vmatprep.mubr.f32.mxu0 %v1965
  %2075 = vmatmul.mubr.f32.gmra.mrb[0].mxu0 %v1964
  %v2076 = vpop.f32.mrb[0].mxu0
  %v2077 = vadd.f32 %v2003, %v2076
  %v2078 = vpop.f32.mrb[0].mxu0
  %2079 = vdwg.mxu0
  %v2080 = vmax.f32 %v2072, 0.0
  %v2081 = vmax.f32 %v2077, 0.0
  %vm2082 = vcmask 7168
  %2083 = vst.msk [vmem:[%s5] sm:$0xff] %vm2082, %v2080
  %2084 = vst.msk [vmem:[%s5 + $0x8] sm:$0xff] %vm2082, %v2081
  // Predicated region
  $region22: #{proposal_classifier_forward.1} parent=0 // pred_check
    _
  $region23: #{proposal_classifier_forward.1} parent=0 // pred_check_branch
    %2086 = sbr.rel (0) target = $region25
  $region24: #{proposal_classifier_forward.1} parent=0 // pred_region
    _
  $region25: #{proposal_classifier_forward.1} parent=0 // pred_fallthru
    _
  // Predicated region
  $region26: #{proposal_classifier_forward.1} parent=0 // pred_check
    _
  $region27: #{proposal_classifier_forward.1} parent=0 // pred_check_branch
    %2088 = sbr.rel (0) target = $region29
  $region28: #{proposal_classifier_forward.1} parent=0 // pred_region
    _
  $region29: #{proposal_classifier_forward.1} parent=0 // pred_fallthru
    _

</llo_original>
